<compile_context>
chip_gen: v5e
topology: v5e:2x2
jax: 0.10.0
libtpu: 0.0.40
codegen_flags: <defaults>
</compile_context>

<pallas_src>
import jax
import jax.numpy as jnp
from jax import lax
from jax.experimental import pallas as pl
from jax.experimental.pallas import tpu as pltpu

# Model hyper-parameters (small, consistent with the module's forward)
S, B, D = 8, 2, 32          # seq, batch, d_model
N = S * B                   # flattened (seq, batch) rows
NHEAD = 4
HEAD_DIM = D // NHEAD
FF = 64                     # dim_feedforward
NUM_LAYERS = 2
EPS = 1e-5                  # LayerNorm eps (PyTorch default)
NEG_INF = -1e30


def _layernorm(x, w, b):
    mu = jnp.mean(x, axis=-1, keepdims=True)
    xc = x - mu
    var = jnp.mean(xc * xc, axis=-1, keepdims=True)
    return xc * lax.rsqrt(var + EPS) * w + b


def fused_encoder_kernel(x_ref,
                         in_w_ref, in_b_ref,        # (L, D, 3D), (L, 1, 3D)  pre-transposed
                         out_w_ref, out_b_ref,      # (L, D, D),  (L, 1, D)
                         ln1_w_ref, ln1_b_ref,      # (L, 1, D)
                         lin1_w_ref, lin1_b_ref,    # (L, D, FF), (L, 1, FF)
                         lin2_w_ref, lin2_b_ref,    # (L, FF, D), (L, 1, D)
                         ln2_w_ref, ln2_b_ref,      # (L, 1, D)
                         fn_w_ref, fn_b_ref,        # (1, D)  final TransformerEncoder.norm
                         o_ref):
    # Rows of x are the (seq, batch) pairs of the (S, B, D) input flattened s-major /
    # b-minor: row r <-> (s = r // B, b = r % B).  Row-wise ops (projections, FFN,
    # LayerNorm) act directly on the dense (N, D) slab; attention is restricted to
    # same-batch rows with a static mask (equivalent to per-batch attention).
    x = x_ref[...]                                        # (N, D) f32

    row_b = lax.broadcasted_iota(jnp.int32, (N, N), 0) % B
    col_b = lax.broadcasted_iota(jnp.int32, (N, N), 1) % B
    same_batch = row_b == col_b                           # hoisted out of the layer loop

    scale = jnp.float32(1.0 / (HEAD_DIM ** 0.5))

    for l in range(NUM_LAYERS):                           # static unroll; weights resident
        # ---- self attention (MultiheadAttention, no mask, dropout = identity) ----
        qkv = jnp.dot(x, in_w_ref[l],
                      preferred_element_type=jnp.float32) + in_b_ref[l]   # (N, 3D)
        q = qkv[:, :D] * scale
        k = qkv[:, D:2 * D]
        v = qkv[:, 2 * D:]
        out_w = out_w_ref[l]                              # (D, D), pre-transposed

        attn = jnp.zeros((N, D), jnp.float32)
        for h in range(NHEAD):                            # static loop over heads
            sl = slice(h * HEAD_DIM, (h + 1) * HEAD_DIM)
            # q · kᵀ without an explicit in-kernel transpose (contract last dims)
            scores = lax.dot_general(q[:, sl], k[:, sl],
                                     dimension_numbers=(((1,), (1,)), ((), ())),
                                     preferred_element_type=jnp.float32)  # (N, N)
            scores = jnp.where(same_batch, scores, NEG_INF)
            scores = scores - jnp.max(scores, axis=-1, keepdims=True)
            p = jnp.exp(scores)
            p = p * pl.reciprocal(jnp.sum(p, axis=-1, keepdims=True))      # EUP
            ctx = jnp.dot(p, v[:, sl],
                          preferred_element_type=jnp.float32)              # (N, HEAD_DIM)
            # fuse out_proj per head: no lane-concatenate of head outputs
            attn = attn + jnp.dot(ctx, out_w[sl, :],
                                  preferred_element_type=jnp.float32)
        attn = attn + out_b_ref[l]

        # residual + LayerNorm1
        x = _layernorm(x + attn, ln1_w_ref[l], ln1_b_ref[l])

        # ---- feed-forward (Linear -> ReLU -> Linear) ----
        h1 = jnp.dot(x, lin1_w_ref[l],
                     preferred_element_type=jnp.float32) + lin1_b_ref[l]   # (N, FF)
        h1 = jnp.maximum(h1, 0.0)
        h2 = jnp.dot(h1, lin2_w_ref[l],
                     preferred_element_type=jnp.float32) + lin2_b_ref[l]   # (N, D)

        # residual + LayerNorm2
        x = _layernorm(x + h2, ln2_w_ref[l], ln2_b_ref[l])

    # optional final TransformerEncoder.norm
    o_ref[...] = _layernorm(x, fn_w_ref[...], fn_b_ref[...])


@jax.jit
def transformer_encoder(src_sbd, params, norm_w, norm_b):
    # (S, B, D) -> (S*B, D): collapse of leading dims, no transpose / relayout needed.
    x = src_sbd.reshape(N, D)
    vmem = pl.BlockSpec(memory_space=pltpu.MemorySpace.VMEM)
    out = pl.pallas_call(
        fused_encoder_kernel,
        out_shape=jax.ShapeDtypeStruct((N, D), jnp.float32),
        in_specs=[vmem] * (1 + len(params) + 2),
        out_specs=vmem,
    )(x, *params, norm_w, norm_b)
    return out.reshape(S, B, D)                           # back to (seq, batch, d_model)


def _xavier_uniform(key, shape):
    fan_out, fan_in = shape
    bound = (6.0 / (fan_in + fan_out)) ** 0.5
    return jax.random.uniform(key, shape, jnp.float32, -bound, bound)


def make_layer_params(key):
    ks = jax.random.split(key, 4)
    # Weights generated in PyTorch layout, then pre-transposed ONCE on the host so the
    # kernel never executes an in-kernel `.T`.
    return (
        _xavier_uniform(ks[0], (3 * D, D)).T,   # in_proj_weight  -> (D, 3D)
        jnp.zeros((1, 3 * D), jnp.float32),     # in_proj_bias
        _xavier_uniform(ks[1], (D, D)).T,       # out_proj.weight -> (D, D)
        jnp.zeros((1, D), jnp.float32),         # out_proj.bias
        jnp.ones((1, D), jnp.float32),          # norm1.weight
        jnp.zeros((1, D), jnp.float32),         # norm1.bias
        _xavier_uniform(ks[2], (FF, D)).T,      # linear1.weight  -> (D, FF)
        jnp.zeros((1, FF), jnp.float32),        # linear1.bias
        _xavier_uniform(ks[3], (D, FF)).T,      # linear2.weight  -> (FF, D)
        jnp.zeros((1, D), jnp.float32),         # linear2.bias
        jnp.ones((1, D), jnp.float32),          # norm2.weight
        jnp.zeros((1, D), jnp.float32),         # norm2.bias
    )


def make_stacked_params(key):
    per_layer = [make_layer_params(jax.random.fold_in(key, i)) for i in range(NUM_LAYERS)]
    # Stack each weight type across layers -> one (NUM_LAYERS, ...) array per weight.
    return tuple(jnp.stack([lp[j] for lp in per_layer], axis=0)
                 for j in range(len(per_layer[0])))


if __name__ == "__main__":
    key = jax.random.PRNGKey(0)
    key, src_key = jax.random.split(key)
    src = jax.random.normal(src_key, (S, B, D), jnp.float32)   # (seq, batch, d_model)

    params = make_stacked_params(key)
    norm_w = jnp.ones((1, D), jnp.float32)      # optional TransformerEncoder.norm
    norm_b = jnp.zeros((1, D), jnp.float32)

    out = transformer_encoder(src, params, norm_w, norm_b)
    jax.block_until_ready(out)
    assert out.shape == (S, B, D)
    assert bool(jnp.all(jnp.isfinite(out)))
    print("KERNEL_OK")
</pallas_src>

<mosaic_0001>
module attributes {stable_mosaic.version = 11 : i64} {
  func.func @fused_encoder_kernel(%arg0: memref<16x32xf32, #tpu.memory_space<vmem>>, %arg1: memref<2x32x96xf32, #tpu.memory_space<vmem>>, %arg2: memref<2x1x96xf32, #tpu.memory_space<vmem>>, %arg3: memref<2x32x32xf32, #tpu.memory_space<vmem>>, %arg4: memref<2x1x32xf32, #tpu.memory_space<vmem>>, %arg5: memref<2x1x32xf32, #tpu.memory_space<vmem>>, %arg6: memref<2x1x32xf32, #tpu.memory_space<vmem>>, %arg7: memref<2x32x64xf32, #tpu.memory_space<vmem>>, %arg8: memref<2x1x64xf32, #tpu.memory_space<vmem>>, %arg9: memref<2x64x32xf32, #tpu.memory_space<vmem>>, %arg10: memref<2x1x32xf32, #tpu.memory_space<vmem>>, %arg11: memref<2x1x32xf32, #tpu.memory_space<vmem>>, %arg12: memref<2x1x32xf32, #tpu.memory_space<vmem>>, %arg13: memref<1x32xf32, #tpu.memory_space<vmem>>, %arg14: memref<1x32xf32, #tpu.memory_space<vmem>>, %arg15: memref<16x32xf32, #tpu.memory_space<vmem>>) attributes {dimension_semantics = [], scalar_prefetch = 0 : i64, scratch_operands = 0 : i64, tpu.core_type = #tpu.core_type<tc>} {
    %c0 = arith.constant 0 : index
    %c0_0 = arith.constant 0 : index
    %0 = vector.load %arg0[%c0, %c0_0] : memref<16x32xf32, #tpu.memory_space<vmem>>, vector<16x32xf32>
    %1 = tpu.iota {dimensions = array<i32: 0>} : vector<16x16xi32>
    %c2_i32 = arith.constant 2 : i32
    %c0_i32 = arith.constant 0 : i32
    %2 = arith.cmpi eq, %c2_i32, %c0_i32 : i32
    %c1_i32 = arith.constant 1 : i32
    %3 = arith.select %2, %c1_i32, %c2_i32 : i32
    %4 = vector.broadcast %3 : i32 to vector<16x16xi32>
    %5 = arith.remsi %1, %4 : vector<16x16xi32>
    %c0_i32_1 = arith.constant 0 : i32
    %6 = vector.broadcast %c0_i32_1 : i32 to vector<16x16xi32>
    %7 = arith.cmpi ne, %5, %6 : vector<16x16xi32>
    %c0_i32_2 = arith.constant 0 : i32
    %8 = vector.broadcast %c0_i32_2 : i32 to vector<16x16xi32>
    %9 = arith.cmpi slt, %5, %8 : vector<16x16xi32>
    %c0_i32_3 = arith.constant 0 : i32
    %10 = arith.cmpi slt, %3, %c0_i32_3 : i32
    %11 = vector.broadcast %10 : i1 to vector<16x16xi1>
    %12 = vector.broadcast %11 : vector<16x16xi1> to vector<16x16xi1>
    %13 = arith.xori %9, %12 : vector<16x16xi1>
    %14 = arith.andi %13, %7 : vector<16x16xi1>
    %15 = vector.broadcast %3 : i32 to vector<16x16xi32>
    %16 = arith.addi %5, %15 : vector<16x16xi32>
    %17 = arith.select %14, %16, %5 : vector<16x16xi1>, vector<16x16xi32>
    %18 = tpu.iota {dimensions = array<i32: 1>} : vector<16x16xi32>
    %c2_i32_4 = arith.constant 2 : i32
    %c0_i32_5 = arith.constant 0 : i32
    %19 = arith.cmpi eq, %c2_i32_4, %c0_i32_5 : i32
    %c1_i32_6 = arith.constant 1 : i32
    %20 = arith.select %19, %c1_i32_6, %c2_i32_4 : i32
    %21 = vector.broadcast %20 : i32 to vector<16x16xi32>
    %22 = arith.remsi %18, %21 : vector<16x16xi32>
    %c0_i32_7 = arith.constant 0 : i32
    %23 = vector.broadcast %c0_i32_7 : i32 to vector<16x16xi32>
    %24 = arith.cmpi ne, %22, %23 : vector<16x16xi32>
    %c0_i32_8 = arith.constant 0 : i32
    %25 = vector.broadcast %c0_i32_8 : i32 to vector<16x16xi32>
    %26 = arith.cmpi slt, %22, %25 : vector<16x16xi32>
    %c0_i32_9 = arith.constant 0 : i32
    %27 = arith.cmpi slt, %20, %c0_i32_9 : i32
    %28 = vector.broadcast %27 : i1 to vector<16x16xi1>
    %29 = vector.broadcast %28 : vector<16x16xi1> to vector<16x16xi1>
    %30 = arith.xori %26, %29 : vector<16x16xi1>
    %31 = arith.andi %30, %24 : vector<16x16xi1>
    %32 = vector.broadcast %20 : i32 to vector<16x16xi32>
    %33 = arith.addi %22, %32 : vector<16x16xi32>
    %34 = arith.select %31, %33, %22 : vector<16x16xi1>, vector<16x16xi32>
    %35 = arith.cmpi eq, %17, %34 : vector<16x16xi32>
    %c0_10 = arith.constant 0 : index
    %c0_11 = arith.constant 0 : index
    %c0_12 = arith.constant 0 : index
    %36 = vector.load %arg1[%c0_10, %c0_11, %c0_12] : memref<2x32x96xf32, #tpu.memory_space<vmem>>, vector<1x32x96xf32>
    %37 = vector.shape_cast %36 : vector<1x32x96xf32> to vector<32x96xf32>
    %cst = arith.constant dense<0.000000e+00> : vector<16x96xf32>
    %38 = tpu.matmul %0, %37, %cst {dimension_numbers = #tpu.dot_dimension_numbers<[1], [0], [0], [1], [0, 0, 1, 1], [], []>} : vector<16x32xf32>, vector<32x96xf32>, vector<16x96xf32> -> vector<16x96xf32>
    %c0_13 = arith.constant 0 : index
    %c0_14 = arith.constant 0 : index
    %c0_15 = arith.constant 0 : index
    %39 = vector.load %arg2[%c0_13, %c0_14, %c0_15] : memref<2x1x96xf32, #tpu.memory_space<vmem>>, vector<1x1x96xf32>
    %40 = vector.shape_cast %39 : vector<1x1x96xf32> to vector<1x96xf32>
    %41 = vector.broadcast %40 : vector<1x96xf32> to vector<16x96xf32>
    %42 = arith.addf %38, %41 : vector<16x96xf32>
    %43 = vector.extract_strided_slice %42 {offsets = [0, 0], sizes = [16, 32], strides = [1, 1]} : vector<16x96xf32> to vector<16x32xf32>
    %cst_16 = arith.constant 0.353553385 : f32
    %44 = vector.broadcast %cst_16 : f32 to vector<16x32xf32>
    %45 = arith.mulf %43, %44 : vector<16x32xf32>
    %46 = vector.extract_strided_slice %42 {offsets = [0, 32], sizes = [16, 32], strides = [1, 1]} : vector<16x96xf32> to vector<16x32xf32>
    %47 = vector.extract_strided_slice %42 {offsets = [0, 64], sizes = [16, 32], strides = [1, 1]} : vector<16x96xf32> to vector<16x32xf32>
    %c0_17 = arith.constant 0 : index
    %c0_18 = arith.constant 0 : index
    %c0_19 = arith.constant 0 : index
    %48 = vector.load %arg3[%c0_17, %c0_18, %c0_19] : memref<2x32x32xf32, #tpu.memory_space<vmem>>, vector<1x32x32xf32>
    %49 = vector.shape_cast %48 : vector<1x32x32xf32> to vector<32x32xf32>
    %cst_20 = arith.constant 0.000000e+00 : f32
    %50 = vector.broadcast %cst_20 : f32 to vector<16x32xf32>
    %51 = vector.extract_strided_slice %45 {offsets = [0, 0], sizes = [16, 8], strides = [1, 1]} : vector<16x32xf32> to vector<16x8xf32>
    %52 = vector.extract_strided_slice %46 {offsets = [0, 0], sizes = [16, 8], strides = [1, 1]} : vector<16x32xf32> to vector<16x8xf32>
    %cst_21 = arith.constant dense<0.000000e+00> : vector<16x16xf32>
    %53 = tpu.matmul %51, %52, %cst_21 {dimension_numbers = #tpu.dot_dimension_numbers<[1], [1], [0], [0], [0, 0, 1, 0], [], []>} : vector<16x8xf32>, vector<16x8xf32>, vector<16x16xf32> -> vector<16x16xf32>
    %cst_22 = arith.constant -1.000000e+30 : f32
    %54 = vector.broadcast %cst_22 : f32 to vector<16x16xf32>
    %55 = arith.select %35, %53, %54 : vector<16x16xi1>, vector<16x16xf32>
    %cst_23 = arith.constant dense<0xFF800000> : vector<16xf32>
    %56 = vector.multi_reduction <maximumf>, %55, %cst_23 [1] : vector<16x16xf32> to vector<16xf32>
    %57 = vector.shape_cast %56 : vector<16xf32> to vector<16x1xf32>
    %58 = vector.broadcast %57 : vector<16x1xf32> to vector<16x16xf32>
    %59 = arith.subf %55, %58 : vector<16x16xf32>
    %60 = math.exp %59 : vector<16x16xf32>
    %cst_24 = arith.constant dense<0.000000e+00> : vector<16xf32>
    %61 = vector.multi_reduction <add>, %60, %cst_24 [1] : vector<16x16xf32> to vector<16xf32>
    %62 = vector.shape_cast %61 : vector<16xf32> to vector<16x1xf32>
    %63 = tpu.reciprocal %62 : vector<16x1xf32> -> vector<16x1xf32>
    %64 = vector.broadcast %63 : vector<16x1xf32> to vector<16x16xf32>
    %65 = arith.mulf %60, %64 : vector<16x16xf32>
    %66 = vector.extract_strided_slice %47 {offsets = [0, 0], sizes = [16, 8], strides = [1, 1]} : vector<16x32xf32> to vector<16x8xf32>
    %cst_25 = arith.constant dense<0.000000e+00> : vector<16x8xf32>
    %67 = tpu.matmul %65, %66, %cst_25 {dimension_numbers = #tpu.dot_dimension_numbers<[1], [0], [0], [1], [0, 0, 1, 1], [], []>} : vector<16x16xf32>, vector<16x8xf32>, vector<16x8xf32> -> vector<16x8xf32>
    %68 = vector.extract_strided_slice %49 {offsets = [0, 0], sizes = [8, 32], strides = [1, 1]} : vector<32x32xf32> to vector<8x32xf32>
    %cst_26 = arith.constant dense<0.000000e+00> : vector<16x32xf32>
    %69 = tpu.matmul %67, %68, %cst_26 {dimension_numbers = #tpu.dot_dimension_numbers<[1], [0], [0], [1], [0, 0, 1, 1], [], []>} : vector<16x8xf32>, vector<8x32xf32>, vector<16x32xf32> -> vector<16x32xf32>
    %70 = arith.addf %50, %69 : vector<16x32xf32>
    %71 = vector.extract_strided_slice %45 {offsets = [0, 8], sizes = [16, 8], strides = [1, 1]} : vector<16x32xf32> to vector<16x8xf32>
    %72 = vector.extract_strided_slice %46 {offsets = [0, 8], sizes = [16, 8], strides = [1, 1]} : vector<16x32xf32> to vector<16x8xf32>
    %cst_27 = arith.constant dense<0.000000e+00> : vector<16x16xf32>
    %73 = tpu.matmul %71, %72, %cst_27 {dimension_numbers = #tpu.dot_dimension_numbers<[1], [1], [0], [0], [0, 0, 1, 0], [], []>} : vector<16x8xf32>, vector<16x8xf32>, vector<16x16xf32> -> vector<16x16xf32>
    %cst_28 = arith.constant -1.000000e+30 : f32
    %74 = vector.broadcast %cst_28 : f32 to vector<16x16xf32>
    %75 = arith.select %35, %73, %74 : vector<16x16xi1>, vector<16x16xf32>
    %cst_29 = arith.constant dense<0xFF800000> : vector<16xf32>
    %76 = vector.multi_reduction <maximumf>, %75, %cst_29 [1] : vector<16x16xf32> to vector<16xf32>
    %77 = vector.shape_cast %76 : vector<16xf32> to vector<16x1xf32>
    %78 = vector.broadcast %77 : vector<16x1xf32> to vector<16x16xf32>
    %79 = arith.subf %75, %78 : vector<16x16xf32>
    %80 = math.exp %79 : vector<16x16xf32>
    %cst_30 = arith.constant dense<0.000000e+00> : vector<16xf32>
    %81 = vector.multi_reduction <add>, %80, %cst_30 [1] : vector<16x16xf32> to vector<16xf32>
    %82 = vector.shape_cast %81 : vector<16xf32> to vector<16x1xf32>
    %83 = tpu.reciprocal %82 : vector<16x1xf32> -> vector<16x1xf32>
    %84 = vector.broadcast %83 : vector<16x1xf32> to vector<16x16xf32>
    %85 = arith.mulf %80, %84 : vector<16x16xf32>
    %86 = vector.extract_strided_slice %47 {offsets = [0, 8], sizes = [16, 8], strides = [1, 1]} : vector<16x32xf32> to vector<16x8xf32>
    %cst_31 = arith.constant dense<0.000000e+00> : vector<16x8xf32>
    %87 = tpu.matmul %85, %86, %cst_31 {dimension_numbers = #tpu.dot_dimension_numbers<[1], [0], [0], [1], [0, 0, 1, 1], [], []>} : vector<16x16xf32>, vector<16x8xf32>, vector<16x8xf32> -> vector<16x8xf32>
    %88 = vector.extract_strided_slice %49 {offsets = [8, 0], sizes = [8, 32], strides = [1, 1]} : vector<32x32xf32> to vector<8x32xf32>
    %cst_32 = arith.constant dense<0.000000e+00> : vector<16x32xf32>
    %89 = tpu.matmul %87, %88, %cst_32 {dimension_numbers = #tpu.dot_dimension_numbers<[1], [0], [0], [1], [0, 0, 1, 1], [], []>} : vector<16x8xf32>, vector<8x32xf32>, vector<16x32xf32> -> vector<16x32xf32>
    %90 = arith.addf %70, %89 : vector<16x32xf32>
    %91 = vector.extract_strided_slice %45 {offsets = [0, 16], sizes = [16, 8], strides = [1, 1]} : vector<16x32xf32> to vector<16x8xf32>
    %92 = vector.extract_strided_slice %46 {offsets = [0, 16], sizes = [16, 8], strides = [1, 1]} : vector<16x32xf32> to vector<16x8xf32>
    %cst_33 = arith.constant dense<0.000000e+00> : vector<16x16xf32>
    %93 = tpu.matmul %91, %92, %cst_33 {dimension_numbers = #tpu.dot_dimension_numbers<[1], [1], [0], [0], [0, 0, 1, 0], [], []>} : vector<16x8xf32>, vector<16x8xf32>, vector<16x16xf32> -> vector<16x16xf32>
    %cst_34 = arith.constant -1.000000e+30 : f32
    %94 = vector.broadcast %cst_34 : f32 to vector<16x16xf32>
    %95 = arith.select %35, %93, %94 : vector<16x16xi1>, vector<16x16xf32>
    %cst_35 = arith.constant dense<0xFF800000> : vector<16xf32>
    %96 = vector.multi_reduction <maximumf>, %95, %cst_35 [1] : vector<16x16xf32> to vector<16xf32>
    %97 = vector.shape_cast %96 : vector<16xf32> to vector<16x1xf32>
    %98 = vector.broadcast %97 : vector<16x1xf32> to vector<16x16xf32>
    %99 = arith.subf %95, %98 : vector<16x16xf32>
    %100 = math.exp %99 : vector<16x16xf32>
    %cst_36 = arith.constant dense<0.000000e+00> : vector<16xf32>
    %101 = vector.multi_reduction <add>, %100, %cst_36 [1] : vector<16x16xf32> to vector<16xf32>
    %102 = vector.shape_cast %101 : vector<16xf32> to vector<16x1xf32>
    %103 = tpu.reciprocal %102 : vector<16x1xf32> -> vector<16x1xf32>
    %104 = vector.broadcast %103 : vector<16x1xf32> to vector<16x16xf32>
    %105 = arith.mulf %100, %104 : vector<16x16xf32>
    %106 = vector.extract_strided_slice %47 {offsets = [0, 16], sizes = [16, 8], strides = [1, 1]} : vector<16x32xf32> to vector<16x8xf32>
    %cst_37 = arith.constant dense<0.000000e+00> : vector<16x8xf32>
    %107 = tpu.matmul %105, %106, %cst_37 {dimension_numbers = #tpu.dot_dimension_numbers<[1], [0], [0], [1], [0, 0, 1, 1], [], []>} : vector<16x16xf32>, vector<16x8xf32>, vector<16x8xf32> -> vector<16x8xf32>
    %108 = vector.extract_strided_slice %49 {offsets = [16, 0], sizes = [8, 32], strides = [1, 1]} : vector<32x32xf32> to vector<8x32xf32>
    %cst_38 = arith.constant dense<0.000000e+00> : vector<16x32xf32>
    %109 = tpu.matmul %107, %108, %cst_38 {dimension_numbers = #tpu.dot_dimension_numbers<[1], [0], [0], [1], [0, 0, 1, 1], [], []>} : vector<16x8xf32>, vector<8x32xf32>, vector<16x32xf32> -> vector<16x32xf32>
    %110 = arith.addf %90, %109 : vector<16x32xf32>
    %111 = vector.extract_strided_slice %45 {offsets = [0, 24], sizes = [16, 8], strides = [1, 1]} : vector<16x32xf32> to vector<16x8xf32>
    %112 = vector.extract_strided_slice %46 {offsets = [0, 24], sizes = [16, 8], strides = [1, 1]} : vector<16x32xf32> to vector<16x8xf32>
    %cst_39 = arith.constant dense<0.000000e+00> : vector<16x16xf32>
    %113 = tpu.matmul %111, %112, %cst_39 {dimension_numbers = #tpu.dot_dimension_numbers<[1], [1], [0], [0], [0, 0, 1, 0], [], []>} : vector<16x8xf32>, vector<16x8xf32>, vector<16x16xf32> -> vector<16x16xf32>
    %cst_40 = arith.constant -1.000000e+30 : f32
    %114 = vector.broadcast %cst_40 : f32 to vector<16x16xf32>
    %115 = arith.select %35, %113, %114 : vector<16x16xi1>, vector<16x16xf32>
    %cst_41 = arith.constant dense<0xFF800000> : vector<16xf32>
    %116 = vector.multi_reduction <maximumf>, %115, %cst_41 [1] : vector<16x16xf32> to vector<16xf32>
    %117 = vector.shape_cast %116 : vector<16xf32> to vector<16x1xf32>
    %118 = vector.broadcast %117 : vector<16x1xf32> to vector<16x16xf32>
    %119 = arith.subf %115, %118 : vector<16x16xf32>
    %120 = math.exp %119 : vector<16x16xf32>
    %cst_42 = arith.constant dense<0.000000e+00> : vector<16xf32>
    %121 = vector.multi_reduction <add>, %120, %cst_42 [1] : vector<16x16xf32> to vector<16xf32>
    %122 = vector.shape_cast %121 : vector<16xf32> to vector<16x1xf32>
    %123 = tpu.reciprocal %122 : vector<16x1xf32> -> vector<16x1xf32>
    %124 = vector.broadcast %123 : vector<16x1xf32> to vector<16x16xf32>
    %125 = arith.mulf %120, %124 : vector<16x16xf32>
    %126 = vector.extract_strided_slice %47 {offsets = [0, 24], sizes = [16, 8], strides = [1, 1]} : vector<16x32xf32> to vector<16x8xf32>
    %cst_43 = arith.constant dense<0.000000e+00> : vector<16x8xf32>
    %127 = tpu.matmul %125, %126, %cst_43 {dimension_numbers = #tpu.dot_dimension_numbers<[1], [0], [0], [1], [0, 0, 1, 1], [], []>} : vector<16x16xf32>, vector<16x8xf32>, vector<16x8xf32> -> vector<16x8xf32>
    %128 = vector.extract_strided_slice %49 {offsets = [24, 0], sizes = [8, 32], strides = [1, 1]} : vector<32x32xf32> to vector<8x32xf32>
    %cst_44 = arith.constant dense<0.000000e+00> : vector<16x32xf32>
    %129 = tpu.matmul %127, %128, %cst_44 {dimension_numbers = #tpu.dot_dimension_numbers<[1], [0], [0], [1], [0, 0, 1, 1], [], []>} : vector<16x8xf32>, vector<8x32xf32>, vector<16x32xf32> -> vector<16x32xf32>
    %130 = arith.addf %110, %129 : vector<16x32xf32>
    %c0_45 = arith.constant 0 : index
    %c0_46 = arith.constant 0 : index
    %c0_47 = arith.constant 0 : index
    %131 = vector.load %arg4[%c0_45, %c0_46, %c0_47] : memref<2x1x32xf32, #tpu.memory_space<vmem>>, vector<1x1x32xf32>
    %132 = vector.shape_cast %131 : vector<1x1x32xf32> to vector<1x32xf32>
    %133 = vector.broadcast %132 : vector<1x32xf32> to vector<16x32xf32>
    %134 = arith.addf %130, %133 : vector<16x32xf32>
    %135 = arith.addf %0, %134 : vector<16x32xf32>
    %c0_48 = arith.constant 0 : index
    %c0_49 = arith.constant 0 : index
    %c0_50 = arith.constant 0 : index
    %136 = vector.load %arg5[%c0_48, %c0_49, %c0_50] : memref<2x1x32xf32, #tpu.memory_space<vmem>>, vector<1x1x32xf32>
    %137 = vector.shape_cast %136 : vector<1x1x32xf32> to vector<1x32xf32>
    %c0_51 = arith.constant 0 : index
    %c0_52 = arith.constant 0 : index
    %c0_53 = arith.constant 0 : index
    %138 = vector.load %arg6[%c0_51, %c0_52, %c0_53] : memref<2x1x32xf32, #tpu.memory_space<vmem>>, vector<1x1x32xf32>
    %139 = vector.shape_cast %138 : vector<1x1x32xf32> to vector<1x32xf32>
    %cst_54 = arith.constant dense<0.000000e+00> : vector<16xf32>
    %140 = vector.multi_reduction <add>, %135, %cst_54 [1] : vector<16x32xf32> to vector<16xf32>
    %141 = vector.shape_cast %140 : vector<16xf32> to vector<16x1xf32>
    %cst_55 = arith.constant 3.200000e+01 : f32
    %142 = vector.broadcast %cst_55 : f32 to vector<16x1xf32>
    %143 = arith.divf %141, %142 : vector<16x1xf32>
    %144 = vector.broadcast %143 : vector<16x1xf32> to vector<16x32xf32>
    %145 = arith.subf %135, %144 : vector<16x32xf32>
    %146 = arith.mulf %145, %145 : vector<16x32xf32>
    %cst_56 = arith.constant dense<0.000000e+00> : vector<16xf32>
    %147 = vector.multi_reduction <add>, %146, %cst_56 [1] : vector<16x32xf32> to vector<16xf32>
    %148 = vector.shape_cast %147 : vector<16xf32> to vector<16x1xf32>
    %cst_57 = arith.constant 3.200000e+01 : f32
    %149 = vector.broadcast %cst_57 : f32 to vector<16x1xf32>
    %150 = arith.divf %148, %149 : vector<16x1xf32>
    %cst_58 = arith.constant 9.99999974E-6 : f32
    %151 = vector.broadcast %cst_58 : f32 to vector<16x1xf32>
    %152 = arith.addf %150, %151 : vector<16x1xf32>
    %153 = math.rsqrt %152 : vector<16x1xf32>
    %154 = vector.broadcast %153 : vector<16x1xf32> to vector<16x32xf32>
    %155 = arith.mulf %145, %154 : vector<16x32xf32>
    %156 = vector.broadcast %137 : vector<1x32xf32> to vector<16x32xf32>
    %157 = arith.mulf %155, %156 : vector<16x32xf32>
    %158 = vector.broadcast %139 : vector<1x32xf32> to vector<16x32xf32>
    %159 = arith.addf %157, %158 : vector<16x32xf32>
    %c0_59 = arith.constant 0 : index
    %c0_60 = arith.constant 0 : index
    %c0_61 = arith.constant 0 : index
    %160 = vector.load %arg7[%c0_59, %c0_60, %c0_61] : memref<2x32x64xf32, #tpu.memory_space<vmem>>, vector<1x32x64xf32>
    %161 = vector.shape_cast %160 : vector<1x32x64xf32> to vector<32x64xf32>
    %cst_62 = arith.constant dense<0.000000e+00> : vector<16x64xf32>
    %162 = tpu.matmul %159, %161, %cst_62 {dimension_numbers = #tpu.dot_dimension_numbers<[1], [0], [0], [1], [0, 0, 1, 1], [], []>} : vector<16x32xf32>, vector<32x64xf32>, vector<16x64xf32> -> vector<16x64xf32>
    %c0_63 = arith.constant 0 : index
    %c0_64 = arith.constant 0 : index
    %c0_65 = arith.constant 0 : index
    %163 = vector.load %arg8[%c0_63, %c0_64, %c0_65] : memref<2x1x64xf32, #tpu.memory_space<vmem>>, vector<1x1x64xf32>
    %164 = vector.shape_cast %163 : vector<1x1x64xf32> to vector<1x64xf32>
    %165 = vector.broadcast %164 : vector<1x64xf32> to vector<16x64xf32>
    %166 = arith.addf %162, %165 : vector<16x64xf32>
    %cst_66 = arith.constant 0.000000e+00 : f32
    %167 = vector.broadcast %cst_66 : f32 to vector<16x64xf32>
    %168 = arith.maximumf %166, %167 : vector<16x64xf32>
    %c0_67 = arith.constant 0 : index
    %c0_68 = arith.constant 0 : index
    %c0_69 = arith.constant 0 : index
    %169 = vector.load %arg9[%c0_67, %c0_68, %c0_69] : memref<2x64x32xf32, #tpu.memory_space<vmem>>, vector<1x64x32xf32>
    %170 = vector.shape_cast %169 : vector<1x64x32xf32> to vector<64x32xf32>
    %cst_70 = arith.constant dense<0.000000e+00> : vector<16x32xf32>
    %171 = tpu.matmul %168, %170, %cst_70 {dimension_numbers = #tpu.dot_dimension_numbers<[1], [0], [0], [1], [0, 0, 1, 1], [], []>} : vector<16x64xf32>, vector<64x32xf32>, vector<16x32xf32> -> vector<16x32xf32>
    %c0_71 = arith.constant 0 : index
    %c0_72 = arith.constant 0 : index
    %c0_73 = arith.constant 0 : index
    %172 = vector.load %arg10[%c0_71, %c0_72, %c0_73] : memref<2x1x32xf32, #tpu.memory_space<vmem>>, vector<1x1x32xf32>
    %173 = vector.shape_cast %172 : vector<1x1x32xf32> to vector<1x32xf32>
    %174 = vector.broadcast %173 : vector<1x32xf32> to vector<16x32xf32>
    %175 = arith.addf %171, %174 : vector<16x32xf32>
    %176 = arith.addf %159, %175 : vector<16x32xf32>
    %c0_74 = arith.constant 0 : index
    %c0_75 = arith.constant 0 : index
    %c0_76 = arith.constant 0 : index
    %177 = vector.load %arg11[%c0_74, %c0_75, %c0_76] : memref<2x1x32xf32, #tpu.memory_space<vmem>>, vector<1x1x32xf32>
    %178 = vector.shape_cast %177 : vector<1x1x32xf32> to vector<1x32xf32>
    %c0_77 = arith.constant 0 : index
    %c0_78 = arith.constant 0 : index
    %c0_79 = arith.constant 0 : index
    %179 = vector.load %arg12[%c0_77, %c0_78, %c0_79] : memref<2x1x32xf32, #tpu.memory_space<vmem>>, vector<1x1x32xf32>
    %180 = vector.shape_cast %179 : vector<1x1x32xf32> to vector<1x32xf32>
    %cst_80 = arith.constant dense<0.000000e+00> : vector<16xf32>
    %181 = vector.multi_reduction <add>, %176, %cst_80 [1] : vector<16x32xf32> to vector<16xf32>
    %182 = vector.shape_cast %181 : vector<16xf32> to vector<16x1xf32>
    %cst_81 = arith.constant 3.200000e+01 : f32
    %183 = vector.broadcast %cst_81 : f32 to vector<16x1xf32>
    %184 = arith.divf %182, %183 : vector<16x1xf32>
    %185 = vector.broadcast %184 : vector<16x1xf32> to vector<16x32xf32>
    %186 = arith.subf %176, %185 : vector<16x32xf32>
    %187 = arith.mulf %186, %186 : vector<16x32xf32>
    %cst_82 = arith.constant dense<0.000000e+00> : vector<16xf32>
    %188 = vector.multi_reduction <add>, %187, %cst_82 [1] : vector<16x32xf32> to vector<16xf32>
    %189 = vector.shape_cast %188 : vector<16xf32> to vector<16x1xf32>
    %cst_83 = arith.constant 3.200000e+01 : f32
    %190 = vector.broadcast %cst_83 : f32 to vector<16x1xf32>
    %191 = arith.divf %189, %190 : vector<16x1xf32>
    %cst_84 = arith.constant 9.99999974E-6 : f32
    %192 = vector.broadcast %cst_84 : f32 to vector<16x1xf32>
    %193 = arith.addf %191, %192 : vector<16x1xf32>
    %194 = math.rsqrt %193 : vector<16x1xf32>
    %195 = vector.broadcast %194 : vector<16x1xf32> to vector<16x32xf32>
    %196 = arith.mulf %186, %195 : vector<16x32xf32>
    %197 = vector.broadcast %178 : vector<1x32xf32> to vector<16x32xf32>
    %198 = arith.mulf %196, %197 : vector<16x32xf32>
    %199 = vector.broadcast %180 : vector<1x32xf32> to vector<16x32xf32>
    %200 = arith.addf %198, %199 : vector<16x32xf32>
    %c1 = arith.constant 1 : index
    %c0_85 = arith.constant 0 : index
    %c0_86 = arith.constant 0 : index
    %201 = vector.load %arg1[%c1, %c0_85, %c0_86] : memref<2x32x96xf32, #tpu.memory_space<vmem>>, vector<1x32x96xf32>
    %202 = vector.shape_cast %201 : vector<1x32x96xf32> to vector<32x96xf32>
    %cst_87 = arith.constant dense<0.000000e+00> : vector<16x96xf32>
    %203 = tpu.matmul %200, %202, %cst_87 {dimension_numbers = #tpu.dot_dimension_numbers<[1], [0], [0], [1], [0, 0, 1, 1], [], []>} : vector<16x32xf32>, vector<32x96xf32>, vector<16x96xf32> -> vector<16x96xf32>
    %c1_88 = arith.constant 1 : index
    %c0_89 = arith.constant 0 : index
    %c0_90 = arith.constant 0 : index
    %204 = vector.load %arg2[%c1_88, %c0_89, %c0_90] : memref<2x1x96xf32, #tpu.memory_space<vmem>>, vector<1x1x96xf32>
    %205 = vector.shape_cast %204 : vector<1x1x96xf32> to vector<1x96xf32>
    %206 = vector.broadcast %205 : vector<1x96xf32> to vector<16x96xf32>
    %207 = arith.addf %203, %206 : vector<16x96xf32>
    %208 = vector.extract_strided_slice %207 {offsets = [0, 0], sizes = [16, 32], strides = [1, 1]} : vector<16x96xf32> to vector<16x32xf32>
    %cst_91 = arith.constant 0.353553385 : f32
    %209 = vector.broadcast %cst_91 : f32 to vector<16x32xf32>
    %210 = arith.mulf %208, %209 : vector<16x32xf32>
    %211 = vector.extract_strided_slice %207 {offsets = [0, 32], sizes = [16, 32], strides = [1, 1]} : vector<16x96xf32> to vector<16x32xf32>
    %212 = vector.extract_strided_slice %207 {offsets = [0, 64], sizes = [16, 32], strides = [1, 1]} : vector<16x96xf32> to vector<16x32xf32>
    %c1_92 = arith.constant 1 : index
    %c0_93 = arith.constant 0 : index
    %c0_94 = arith.constant 0 : index
    %213 = vector.load %arg3[%c1_92, %c0_93, %c0_94] : memref<2x32x32xf32, #tpu.memory_space<vmem>>, vector<1x32x32xf32>
    %214 = vector.shape_cast %213 : vector<1x32x32xf32> to vector<32x32xf32>
    %cst_95 = arith.constant 0.000000e+00 : f32
    %215 = vector.broadcast %cst_95 : f32 to vector<16x32xf32>
    %216 = vector.extract_strided_slice %210 {offsets = [0, 0], sizes = [16, 8], strides = [1, 1]} : vector<16x32xf32> to vector<16x8xf32>
    %217 = vector.extract_strided_slice %211 {offsets = [0, 0], sizes = [16, 8], strides = [1, 1]} : vector<16x32xf32> to vector<16x8xf32>
    %cst_96 = arith.constant dense<0.000000e+00> : vector<16x16xf32>
    %218 = tpu.matmul %216, %217, %cst_96 {dimension_numbers = #tpu.dot_dimension_numbers<[1], [1], [0], [0], [0, 0, 1, 0], [], []>} : vector<16x8xf32>, vector<16x8xf32>, vector<16x16xf32> -> vector<16x16xf32>
    %cst_97 = arith.constant -1.000000e+30 : f32
    %219 = vector.broadcast %cst_97 : f32 to vector<16x16xf32>
    %220 = arith.select %35, %218, %219 : vector<16x16xi1>, vector<16x16xf32>
    %cst_98 = arith.constant dense<0xFF800000> : vector<16xf32>
    %221 = vector.multi_reduction <maximumf>, %220, %cst_98 [1] : vector<16x16xf32> to vector<16xf32>
    %222 = vector.shape_cast %221 : vector<16xf32> to vector<16x1xf32>
    %223 = vector.broadcast %222 : vector<16x1xf32> to vector<16x16xf32>
    %224 = arith.subf %220, %223 : vector<16x16xf32>
    %225 = math.exp %224 : vector<16x16xf32>
    %cst_99 = arith.constant dense<0.000000e+00> : vector<16xf32>
    %226 = vector.multi_reduction <add>, %225, %cst_99 [1] : vector<16x16xf32> to vector<16xf32>
    %227 = vector.shape_cast %226 : vector<16xf32> to vector<16x1xf32>
    %228 = tpu.reciprocal %227 : vector<16x1xf32> -> vector<16x1xf32>
    %229 = vector.broadcast %228 : vector<16x1xf32> to vector<16x16xf32>
    %230 = arith.mulf %225, %229 : vector<16x16xf32>
    %231 = vector.extract_strided_slice %212 {offsets = [0, 0], sizes = [16, 8], strides = [1, 1]} : vector<16x32xf32> to vector<16x8xf32>
    %cst_100 = arith.constant dense<0.000000e+00> : vector<16x8xf32>
    %232 = tpu.matmul %230, %231, %cst_100 {dimension_numbers = #tpu.dot_dimension_numbers<[1], [0], [0], [1], [0, 0, 1, 1], [], []>} : vector<16x16xf32>, vector<16x8xf32>, vector<16x8xf32> -> vector<16x8xf32>
    %233 = vector.extract_strided_slice %214 {offsets = [0, 0], sizes = [8, 32], strides = [1, 1]} : vector<32x32xf32> to vector<8x32xf32>
    %cst_101 = arith.constant dense<0.000000e+00> : vector<16x32xf32>
    %234 = tpu.matmul %232, %233, %cst_101 {dimension_numbers = #tpu.dot_dimension_numbers<[1], [0], [0], [1], [0, 0, 1, 1], [], []>} : vector<16x8xf32>, vector<8x32xf32>, vector<16x32xf32> -> vector<16x32xf32>
    %235 = arith.addf %215, %234 : vector<16x32xf32>
    %236 = vector.extract_strided_slice %210 {offsets = [0, 8], sizes = [16, 8], strides = [1, 1]} : vector<16x32xf32> to vector<16x8xf32>
    %237 = vector.extract_strided_slice %211 {offsets = [0, 8], sizes = [16, 8], strides = [1, 1]} : vector<16x32xf32> to vector<16x8xf32>
    %cst_102 = arith.constant dense<0.000000e+00> : vector<16x16xf32>
    %238 = tpu.matmul %236, %237, %cst_102 {dimension_numbers = #tpu.dot_dimension_numbers<[1], [1], [0], [0], [0, 0, 1, 0], [], []>} : vector<16x8xf32>, vector<16x8xf32>, vector<16x16xf32> -> vector<16x16xf32>
    %cst_103 = arith.constant -1.000000e+30 : f32
    %239 = vector.broadcast %cst_103 : f32 to vector<16x16xf32>
    %240 = arith.select %35, %238, %239 : vector<16x16xi1>, vector<16x16xf32>
    %cst_104 = arith.constant dense<0xFF800000> : vector<16xf32>
    %241 = vector.multi_reduction <maximumf>, %240, %cst_104 [1] : vector<16x16xf32> to vector<16xf32>
    %242 = vector.shape_cast %241 : vector<16xf32> to vector<16x1xf32>
    %243 = vector.broadcast %242 : vector<16x1xf32> to vector<16x16xf32>
    %244 = arith.subf %240, %243 : vector<16x16xf32>
    %245 = math.exp %244 : vector<16x16xf32>
    %cst_105 = arith.constant dense<0.000000e+00> : vector<16xf32>
    %246 = vector.multi_reduction <add>, %245, %cst_105 [1] : vector<16x16xf32> to vector<16xf32>
    %247 = vector.shape_cast %246 : vector<16xf32> to vector<16x1xf32>
    %248 = tpu.reciprocal %247 : vector<16x1xf32> -> vector<16x1xf32>
    %249 = vector.broadcast %248 : vector<16x1xf32> to vector<16x16xf32>
    %250 = arith.mulf %245, %249 : vector<16x16xf32>
    %251 = vector.extract_strided_slice %212 {offsets = [0, 8], sizes = [16, 8], strides = [1, 1]} : vector<16x32xf32> to vector<16x8xf32>
    %cst_106 = arith.constant dense<0.000000e+00> : vector<16x8xf32>
    %252 = tpu.matmul %250, %251, %cst_106 {dimension_numbers = #tpu.dot_dimension_numbers<[1], [0], [0], [1], [0, 0, 1, 1], [], []>} : vector<16x16xf32>, vector<16x8xf32>, vector<16x8xf32> -> vector<16x8xf32>
    %253 = vector.extract_strided_slice %214 {offsets = [8, 0], sizes = [8, 32], strides = [1, 1]} : vector<32x32xf32> to vector<8x32xf32>
    %cst_107 = arith.constant dense<0.000000e+00> : vector<16x32xf32>
    %254 = tpu.matmul %252, %253, %cst_107 {dimension_numbers = #tpu.dot_dimension_numbers<[1], [0], [0], [1], [0, 0, 1, 1], [], []>} : vector<16x8xf32>, vector<8x32xf32>, vector<16x32xf32> -> vector<16x32xf32>
    %255 = arith.addf %235, %254 : vector<16x32xf32>
    %256 = vector.extract_strided_slice %210 {offsets = [0, 16], sizes = [16, 8], strides = [1, 1]} : vector<16x32xf32> to vector<16x8xf32>
    %257 = vector.extract_strided_slice %211 {offsets = [0, 16], sizes = [16, 8], strides = [1, 1]} : vector<16x32xf32> to vector<16x8xf32>
    %cst_108 = arith.constant dense<0.000000e+00> : vector<16x16xf32>
    %258 = tpu.matmul %256, %257, %cst_108 {dimension_numbers = #tpu.dot_dimension_numbers<[1], [1], [0], [0], [0, 0, 1, 0], [], []>} : vector<16x8xf32>, vector<16x8xf32>, vector<16x16xf32> -> vector<16x16xf32>
    %cst_109 = arith.constant -1.000000e+30 : f32
    %259 = vector.broadcast %cst_109 : f32 to vector<16x16xf32>
    %260 = arith.select %35, %258, %259 : vector<16x16xi1>, vector<16x16xf32>
    %cst_110 = arith.constant dense<0xFF800000> : vector<16xf32>
    %261 = vector.multi_reduction <maximumf>, %260, %cst_110 [1] : vector<16x16xf32> to vector<16xf32>
    %262 = vector.shape_cast %261 : vector<16xf32> to vector<16x1xf32>
    %263 = vector.broadcast %262 : vector<16x1xf32> to vector<16x16xf32>
    %264 = arith.subf %260, %263 : vector<16x16xf32>
    %265 = math.exp %264 : vector<16x16xf32>
    %cst_111 = arith.constant dense<0.000000e+00> : vector<16xf32>
    %266 = vector.multi_reduction <add>, %265, %cst_111 [1] : vector<16x16xf32> to vector<16xf32>
    %267 = vector.shape_cast %266 : vector<16xf32> to vector<16x1xf32>
    %268 = tpu.reciprocal %267 : vector<16x1xf32> -> vector<16x1xf32>
    %269 = vector.broadcast %268 : vector<16x1xf32> to vector<16x16xf32>
    %270 = arith.mulf %265, %269 : vector<16x16xf32>
    %271 = vector.extract_strided_slice %212 {offsets = [0, 16], sizes = [16, 8], strides = [1, 1]} : vector<16x32xf32> to vector<16x8xf32>
    %cst_112 = arith.constant dense<0.000000e+00> : vector<16x8xf32>
    %272 = tpu.matmul %270, %271, %cst_112 {dimension_numbers = #tpu.dot_dimension_numbers<[1], [0], [0], [1], [0, 0, 1, 1], [], []>} : vector<16x16xf32>, vector<16x8xf32>, vector<16x8xf32> -> vector<16x8xf32>
    %273 = vector.extract_strided_slice %214 {offsets = [16, 0], sizes = [8, 32], strides = [1, 1]} : vector<32x32xf32> to vector<8x32xf32>
    %cst_113 = arith.constant dense<0.000000e+00> : vector<16x32xf32>
    %274 = tpu.matmul %272, %273, %cst_113 {dimension_numbers = #tpu.dot_dimension_numbers<[1], [0], [0], [1], [0, 0, 1, 1], [], []>} : vector<16x8xf32>, vector<8x32xf32>, vector<16x32xf32> -> vector<16x32xf32>
    %275 = arith.addf %255, %274 : vector<16x32xf32>
    %276 = vector.extract_strided_slice %210 {offsets = [0, 24], sizes = [16, 8], strides = [1, 1]} : vector<16x32xf32> to vector<16x8xf32>
    %277 = vector.extract_strided_slice %211 {offsets = [0, 24], sizes = [16, 8], strides = [1, 1]} : vector<16x32xf32> to vector<16x8xf32>
    %cst_114 = arith.constant dense<0.000000e+00> : vector<16x16xf32>
    %278 = tpu.matmul %276, %277, %cst_114 {dimension_numbers = #tpu.dot_dimension_numbers<[1], [1], [0], [0], [0, 0, 1, 0], [], []>} : vector<16x8xf32>, vector<16x8xf32>, vector<16x16xf32> -> vector<16x16xf32>
    %cst_115 = arith.constant -1.000000e+30 : f32
    %279 = vector.broadcast %cst_115 : f32 to vector<16x16xf32>
    %280 = arith.select %35, %278, %279 : vector<16x16xi1>, vector<16x16xf32>
    %cst_116 = arith.constant dense<0xFF800000> : vector<16xf32>
    %281 = vector.multi_reduction <maximumf>, %280, %cst_116 [1] : vector<16x16xf32> to vector<16xf32>
    %282 = vector.shape_cast %281 : vector<16xf32> to vector<16x1xf32>
    %283 = vector.broadcast %282 : vector<16x1xf32> to vector<16x16xf32>
    %284 = arith.subf %280, %283 : vector<16x16xf32>
    %285 = math.exp %284 : vector<16x16xf32>
    %cst_117 = arith.constant dense<0.000000e+00> : vector<16xf32>
    %286 = vector.multi_reduction <add>, %285, %cst_117 [1] : vector<16x16xf32> to vector<16xf32>
    %287 = vector.shape_cast %286 : vector<16xf32> to vector<16x1xf32>
    %288 = tpu.reciprocal %287 : vector<16x1xf32> -> vector<16x1xf32>
    %289 = vector.broadcast %288 : vector<16x1xf32> to vector<16x16xf32>
    %290 = arith.mulf %285, %289 : vector<16x16xf32>
    %291 = vector.extract_strided_slice %212 {offsets = [0, 24], sizes = [16, 8], strides = [1, 1]} : vector<16x32xf32> to vector<16x8xf32>
    %cst_118 = arith.constant dense<0.000000e+00> : vector<16x8xf32>
    %292 = tpu.matmul %290, %291, %cst_118 {dimension_numbers = #tpu.dot_dimension_numbers<[1], [0], [0], [1], [0, 0, 1, 1], [], []>} : vector<16x16xf32>, vector<16x8xf32>, vector<16x8xf32> -> vector<16x8xf32>
    %293 = vector.extract_strided_slice %214 {offsets = [24, 0], sizes = [8, 32], strides = [1, 1]} : vector<32x32xf32> to vector<8x32xf32>
    %cst_119 = arith.constant dense<0.000000e+00> : vector<16x32xf32>
    %294 = tpu.matmul %292, %293, %cst_119 {dimension_numbers = #tpu.dot_dimension_numbers<[1], [0], [0], [1], [0, 0, 1, 1], [], []>} : vector<16x8xf32>, vector<8x32xf32>, vector<16x32xf32> -> vector<16x32xf32>
    %295 = arith.addf %275, %294 : vector<16x32xf32>
    %c1_120 = arith.constant 1 : index
    %c0_121 = arith.constant 0 : index
    %c0_122 = arith.constant 0 : index
    %296 = vector.load %arg4[%c1_120, %c0_121, %c0_122] : memref<2x1x32xf32, #tpu.memory_space<vmem>>, vector<1x1x32xf32>
    %297 = vector.shape_cast %296 : vector<1x1x32xf32> to vector<1x32xf32>
    %298 = vector.broadcast %297 : vector<1x32xf32> to vector<16x32xf32>
    %299 = arith.addf %295, %298 : vector<16x32xf32>
    %300 = arith.addf %200, %299 : vector<16x32xf32>
    %c1_123 = arith.constant 1 : index
    %c0_124 = arith.constant 0 : index
    %c0_125 = arith.constant 0 : index
    %301 = vector.load %arg5[%c1_123, %c0_124, %c0_125] : memref<2x1x32xf32, #tpu.memory_space<vmem>>, vector<1x1x32xf32>
    %302 = vector.shape_cast %301 : vector<1x1x32xf32> to vector<1x32xf32>
    %c1_126 = arith.constant 1 : index
    %c0_127 = arith.constant 0 : index
    %c0_128 = arith.constant 0 : index
    %303 = vector.load %arg6[%c1_126, %c0_127, %c0_128] : memref<2x1x32xf32, #tpu.memory_space<vmem>>, vector<1x1x32xf32>
    %304 = vector.shape_cast %303 : vector<1x1x32xf32> to vector<1x32xf32>
    %cst_129 = arith.constant dense<0.000000e+00> : vector<16xf32>
    %305 = vector.multi_reduction <add>, %300, %cst_129 [1] : vector<16x32xf32> to vector<16xf32>
    %306 = vector.shape_cast %305 : vector<16xf32> to vector<16x1xf32>
    %cst_130 = arith.constant 3.200000e+01 : f32
    %307 = vector.broadcast %cst_130 : f32 to vector<16x1xf32>
    %308 = arith.divf %306, %307 : vector<16x1xf32>
    %309 = vector.broadcast %308 : vector<16x1xf32> to vector<16x32xf32>
    %310 = arith.subf %300, %309 : vector<16x32xf32>
    %311 = arith.mulf %310, %310 : vector<16x32xf32>
    %cst_131 = arith.constant dense<0.000000e+00> : vector<16xf32>
    %312 = vector.multi_reduction <add>, %311, %cst_131 [1] : vector<16x32xf32> to vector<16xf32>
    %313 = vector.shape_cast %312 : vector<16xf32> to vector<16x1xf32>
    %cst_132 = arith.constant 3.200000e+01 : f32
    %314 = vector.broadcast %cst_132 : f32 to vector<16x1xf32>
    %315 = arith.divf %313, %314 : vector<16x1xf32>
    %cst_133 = arith.constant 9.99999974E-6 : f32
    %316 = vector.broadcast %cst_133 : f32 to vector<16x1xf32>
    %317 = arith.addf %315, %316 : vector<16x1xf32>
    %318 = math.rsqrt %317 : vector<16x1xf32>
    %319 = vector.broadcast %318 : vector<16x1xf32> to vector<16x32xf32>
    %320 = arith.mulf %310, %319 : vector<16x32xf32>
    %321 = vector.broadcast %302 : vector<1x32xf32> to vector<16x32xf32>
    %322 = arith.mulf %320, %321 : vector<16x32xf32>
    %323 = vector.broadcast %304 : vector<1x32xf32> to vector<16x32xf32>
    %324 = arith.addf %322, %323 : vector<16x32xf32>
    %c1_134 = arith.constant 1 : index
    %c0_135 = arith.constant 0 : index
    %c0_136 = arith.constant 0 : index
    %325 = vector.load %arg7[%c1_134, %c0_135, %c0_136] : memref<2x32x64xf32, #tpu.memory_space<vmem>>, vector<1x32x64xf32>
    %326 = vector.shape_cast %325 : vector<1x32x64xf32> to vector<32x64xf32>
    %cst_137 = arith.constant dense<0.000000e+00> : vector<16x64xf32>
    %327 = tpu.matmul %324, %326, %cst_137 {dimension_numbers = #tpu.dot_dimension_numbers<[1], [0], [0], [1], [0, 0, 1, 1], [], []>} : vector<16x32xf32>, vector<32x64xf32>, vector<16x64xf32> -> vector<16x64xf32>
    %c1_138 = arith.constant 1 : index
    %c0_139 = arith.constant 0 : index
    %c0_140 = arith.constant 0 : index
    %328 = vector.load %arg8[%c1_138, %c0_139, %c0_140] : memref<2x1x64xf32, #tpu.memory_space<vmem>>, vector<1x1x64xf32>
    %329 = vector.shape_cast %328 : vector<1x1x64xf32> to vector<1x64xf32>
    %330 = vector.broadcast %329 : vector<1x64xf32> to vector<16x64xf32>
    %331 = arith.addf %327, %330 : vector<16x64xf32>
    %cst_141 = arith.constant 0.000000e+00 : f32
    %332 = vector.broadcast %cst_141 : f32 to vector<16x64xf32>
    %333 = arith.maximumf %331, %332 : vector<16x64xf32>
    %c1_142 = arith.constant 1 : index
    %c0_143 = arith.constant 0 : index
    %c0_144 = arith.constant 0 : index
    %334 = vector.load %arg9[%c1_142, %c0_143, %c0_144] : memref<2x64x32xf32, #tpu.memory_space<vmem>>, vector<1x64x32xf32>
    %335 = vector.shape_cast %334 : vector<1x64x32xf32> to vector<64x32xf32>
    %cst_145 = arith.constant dense<0.000000e+00> : vector<16x32xf32>
    %336 = tpu.matmul %333, %335, %cst_145 {dimension_numbers = #tpu.dot_dimension_numbers<[1], [0], [0], [1], [0, 0, 1, 1], [], []>} : vector<16x64xf32>, vector<64x32xf32>, vector<16x32xf32> -> vector<16x32xf32>
    %c1_146 = arith.constant 1 : index
    %c0_147 = arith.constant 0 : index
    %c0_148 = arith.constant 0 : index
    %337 = vector.load %arg10[%c1_146, %c0_147, %c0_148] : memref<2x1x32xf32, #tpu.memory_space<vmem>>, vector<1x1x32xf32>
    %338 = vector.shape_cast %337 : vector<1x1x32xf32> to vector<1x32xf32>
    %339 = vector.broadcast %338 : vector<1x32xf32> to vector<16x32xf32>
    %340 = arith.addf %336, %339 : vector<16x32xf32>
    %341 = arith.addf %324, %340 : vector<16x32xf32>
    %c1_149 = arith.constant 1 : index
    %c0_150 = arith.constant 0 : index
    %c0_151 = arith.constant 0 : index
    %342 = vector.load %arg11[%c1_149, %c0_150, %c0_151] : memref<2x1x32xf32, #tpu.memory_space<vmem>>, vector<1x1x32xf32>
    %343 = vector.shape_cast %342 : vector<1x1x32xf32> to vector<1x32xf32>
    %c1_152 = arith.constant 1 : index
    %c0_153 = arith.constant 0 : index
    %c0_154 = arith.constant 0 : index
    %344 = vector.load %arg12[%c1_152, %c0_153, %c0_154] : memref<2x1x32xf32, #tpu.memory_space<vmem>>, vector<1x1x32xf32>
    %345 = vector.shape_cast %344 : vector<1x1x32xf32> to vector<1x32xf32>
    %cst_155 = arith.constant dense<0.000000e+00> : vector<16xf32>
    %346 = vector.multi_reduction <add>, %341, %cst_155 [1] : vector<16x32xf32> to vector<16xf32>
    %347 = vector.shape_cast %346 : vector<16xf32> to vector<16x1xf32>
    %cst_156 = arith.constant 3.200000e+01 : f32
    %348 = vector.broadcast %cst_156 : f32 to vector<16x1xf32>
    %349 = arith.divf %347, %348 : vector<16x1xf32>
    %350 = vector.broadcast %349 : vector<16x1xf32> to vector<16x32xf32>
    %351 = arith.subf %341, %350 : vector<16x32xf32>
    %352 = arith.mulf %351, %351 : vector<16x32xf32>
    %cst_157 = arith.constant dense<0.000000e+00> : vector<16xf32>
    %353 = vector.multi_reduction <add>, %352, %cst_157 [1] : vector<16x32xf32> to vector<16xf32>
    %354 = vector.shape_cast %353 : vector<16xf32> to vector<16x1xf32>
    %cst_158 = arith.constant 3.200000e+01 : f32
    %355 = vector.broadcast %cst_158 : f32 to vector<16x1xf32>
    %356 = arith.divf %354, %355 : vector<16x1xf32>
    %cst_159 = arith.constant 9.99999974E-6 : f32
    %357 = vector.broadcast %cst_159 : f32 to vector<16x1xf32>
    %358 = arith.addf %356, %357 : vector<16x1xf32>
    %359 = math.rsqrt %358 : vector<16x1xf32>
    %360 = vector.broadcast %359 : vector<16x1xf32> to vector<16x32xf32>
    %361 = arith.mulf %351, %360 : vector<16x32xf32>
    %362 = vector.broadcast %343 : vector<1x32xf32> to vector<16x32xf32>
    %363 = arith.mulf %361, %362 : vector<16x32xf32>
    %364 = vector.broadcast %345 : vector<1x32xf32> to vector<16x32xf32>
    %365 = arith.addf %363, %364 : vector<16x32xf32>
    %c0_160 = arith.constant 0 : index
    %c0_161 = arith.constant 0 : index
    %366 = vector.load %arg13[%c0_160, %c0_161] : memref<1x32xf32, #tpu.memory_space<vmem>>, vector<1x32xf32>
    %c0_162 = arith.constant 0 : index
    %c0_163 = arith.constant 0 : index
    %367 = vector.load %arg14[%c0_162, %c0_163] : memref<1x32xf32, #tpu.memory_space<vmem>>, vector<1x32xf32>
    %cst_164 = arith.constant dense<0.000000e+00> : vector<16xf32>
    %368 = vector.multi_reduction <add>, %365, %cst_164 [1] : vector<16x32xf32> to vector<16xf32>
    %369 = vector.shape_cast %368 : vector<16xf32> to vector<16x1xf32>
    %cst_165 = arith.constant 3.200000e+01 : f32
    %370 = vector.broadcast %cst_165 : f32 to vector<16x1xf32>
    %371 = arith.divf %369, %370 : vector<16x1xf32>
    %372 = vector.broadcast %371 : vector<16x1xf32> to vector<16x32xf32>
    %373 = arith.subf %365, %372 : vector<16x32xf32>
    %374 = arith.mulf %373, %373 : vector<16x32xf32>
    %cst_166 = arith.constant dense<0.000000e+00> : vector<16xf32>
    %375 = vector.multi_reduction <add>, %374, %cst_166 [1] : vector<16x32xf32> to vector<16xf32>
    %376 = vector.shape_cast %375 : vector<16xf32> to vector<16x1xf32>
    %cst_167 = arith.constant 3.200000e+01 : f32
    %377 = vector.broadcast %cst_167 : f32 to vector<16x1xf32>
    %378 = arith.divf %376, %377 : vector<16x1xf32>
    %cst_168 = arith.constant 9.99999974E-6 : f32
    %379 = vector.broadcast %cst_168 : f32 to vector<16x1xf32>
    %380 = arith.addf %378, %379 : vector<16x1xf32>
    %381 = math.rsqrt %380 : vector<16x1xf32>
    %382 = vector.broadcast %381 : vector<16x1xf32> to vector<16x32xf32>
    %383 = arith.mulf %373, %382 : vector<16x32xf32>
    %384 = vector.broadcast %366 : vector<1x32xf32> to vector<16x32xf32>
    %385 = arith.mulf %383, %384 : vector<16x32xf32>
    %386 = vector.broadcast %367 : vector<1x32xf32> to vector<16x32xf32>
    %387 = arith.addf %385, %386 : vector<16x32xf32>
    %c0_169 = arith.constant 0 : index
    %c0_170 = arith.constant 0 : index
    %388 = vector.load %arg15[%c0_169, %c0_170] : memref<16x32xf32, #tpu.memory_space<vmem>>, vector<16x32xf32>
    tpu.vector_store %arg15[%c0_169, %c0_170], %387 {strides = array<i32>} : memref<16x32xf32, #tpu.memory_space<vmem>>, vector<16x32xf32>,
    return
  }
}

</mosaic_0001>

<llo_original>
// kernel: transformer_encoder.1
$region0: #{transformer_encoder.1}
  #allocation0 [shape = 'u32[]', space=smem, size = 0x4, offset = 0x4, fixed_abs, tag = 'smem constant byte address 0x4 - core index']
  #allocation1 [shape = 'u32[72,128]{1,0:T(1,128)}', space=vmem, size = 0x9000, scoped, tag = 'internal scratch']
  %s0 = inlined_call_operand.hbm [shape: f32[16,32], index: 0, kind: input, shape index: {}]
  %s1 = inlined_call_operand.vmem [shape: f32[2,32,96], index: 1, kind: input, shape index: {}]
  %s2 = inlined_call_operand.vmem [shape: f32[2,1,96], index: 2, kind: input, shape index: {}]
  %s3 = inlined_call_operand.vmem [shape: f32[2,32,32], index: 3, kind: input, shape index: {}]
  %s4 = inlined_call_operand.hbm [shape: f32[2,1,32], index: 4, kind: input, shape index: {}]
  %s5 = inlined_call_operand.vmem [shape: f32[2,1,32], index: 5, kind: input, shape index: {}]
  %s6 = inlined_call_operand.hbm [shape: f32[2,1,32], index: 6, kind: input, shape index: {}]
  %s7 = inlined_call_operand.vmem [shape: f32[2,32,64], index: 7, kind: input, shape index: {}]
  %s8 = inlined_call_operand.vmem [shape: f32[2,1,64], index: 8, kind: input, shape index: {}]
  %s9 = inlined_call_operand.vmem [shape: f32[2,64,32], index: 9, kind: input, shape index: {}]
  %s10 = inlined_call_operand.vmem [shape: f32[2,1,32], index: 10, kind: input, shape index: {}]
  %s11 = inlined_call_operand.vmem [shape: f32[2,1,32], index: 11, kind: input, shape index: {}]
  %s12 = inlined_call_operand.hbm [shape: f32[2,1,32], index: 12, kind: input, shape index: {}]
  %s13 = inlined_call_operand.vmem [shape: f32[1,32], index: 13, kind: input, shape index: {}]
  %s14 = inlined_call_operand.vmem [shape: f32[1,32], index: 14, kind: input, shape index: {}]
  %s15 = inlined_call_operand.hbm [shape: f32[16,32], index: 15, kind: output, shape index: {}]
  %s16 = sld [smem:[#allocation0]]
  $region86: #{transformer_encoder.1} parent=0
    _
  %s18 = ssub.s32 1, %s16
  %s19 = scalar_select 0, %s18, %s16
  $region1: #{transformer_encoder.1} parent=0
    #allocation2 [shape = 'u8[8192]{0}', space=vmem, size = 0x2000, scoped, tag = 'input window, operand 0, single buffered']
    #allocation3 [shape = 's32[1]{0}', space=sflag, size = 0x4, scoped, tag = 'scoped memory for transformer_encoder.1']
    #allocation4 [shape = 's32[1]{0}', space=sflag, size = 0x4, scoped, tag = 'scoped memory for transformer_encoder.1']
    #allocation5 [shape = 'u8[1024]{0}', space=vmem, size = 0x400, scoped, tag = 'input window, operand 4, single buffered']
    #allocation6 [shape = 's32[1]{0}', space=sflag, size = 0x4, scoped, tag = 'scoped memory for transformer_encoder.1']
    #allocation7 [shape = 'u8[1024]{0}', space=vmem, size = 0x400, scoped, tag = 'input window, operand 6, single buffered']
    #allocation8 [shape = 'u8[1024]{0}', space=vmem, size = 0x400, scoped, tag = 'input window, operand 12, single buffered']
    #allocation9 [shape = 's32[1]{0}', space=sflag, size = 0x4, scoped, tag = 'scoped memory for transformer_encoder.1']
    #allocation10 [shape = 'u8[8192]{0}', space=vmem, size = 0x2000, scoped, tag = 'output window, operand 0, single buffered']
    %20 = vsyncpa [#allocation3], 0
    %21 = vsyncpa [#allocation6], 0
    %22 = vsyncpa [#allocation9], 0
    %23 = vsyncpa [#allocation4], 0
    // Predicated region
    $region2: #{transformer_encoder.1} parent=1 // pred_check
      _
    $region3: #{transformer_encoder.1} parent=1 // pred_check_branch
      %25 = sbr.rel (0) target = $region5
    $region4: #{transformer_encoder.1} parent=1 // pred_region
      %27 = vsyncadd [#allocation3], 0
      %s28 = sshll.u32 %s0, 4
      %s29 = int_to_ptr.hbm [resolvable:$true] %s28
      %s30 = sshll.u32 [#allocation2], 4
      %s31 = int_to_ptr.vmem [resolvable:$true] %s30
      %36 = dma.hbm_to_vmem [thread:$0]  %s29, 256, %s31, [#allocation3], 128, 128, 8
    $region5: #{transformer_encoder.1} parent=1 // pred_fallthru
      _
    // Predicated region
    $region6: #{transformer_encoder.1} parent=1 // pred_check
      _
    $region7: #{transformer_encoder.1} parent=1 // pred_check_branch
      %38 = sbr.rel (0) target = $region9
    $region8: #{transformer_encoder.1} parent=1 // pred_region
      _
    $region9: #{transformer_encoder.1} parent=1 // pred_fallthru
      _
    // Predicated region
    $region10: #{transformer_encoder.1} parent=1 // pred_check
      _
    $region11: #{transformer_encoder.1} parent=1 // pred_check_branch
      %40 = sbr.rel (0) target = $region13
    $region12: #{transformer_encoder.1} parent=1 // pred_region
      _
    $region13: #{transformer_encoder.1} parent=1 // pred_fallthru
      _
    // Predicated region
    $region14: #{transformer_encoder.1} parent=1 // pred_check
      _
    $region15: #{transformer_encoder.1} parent=1 // pred_check_branch
      %42 = sbr.rel (0) target = $region17
    $region16: #{transformer_encoder.1} parent=1 // pred_region
      _
    $region17: #{transformer_encoder.1} parent=1 // pred_fallthru
      _
    // Predicated region
    $region18: #{transformer_encoder.1} parent=1 // pred_check
      _
    $region19: #{transformer_encoder.1} parent=1 // pred_check_branch
      %44 = sbr.rel (0) target = $region21
    $region20: #{transformer_encoder.1} parent=1 // pred_region
      %46 = vsyncadd [#allocation6], 0
      %s47 = sshll.u32 %s4, 4
      %s48 = int_to_ptr.hbm [resolvable:$true] %s47
      %s49 = sshll.u32 [#allocation5], 4
      %s50 = int_to_ptr.vmem [resolvable:$true] %s49
      %55 = dma.hbm_to_vmem [thread:$0]  %s48, 32, %s50, [#allocation6], 16, 16, 1
    $region21: #{transformer_encoder.1} parent=1 // pred_fallthru
      _
    // Predicated region
    $region22: #{transformer_encoder.1} parent=1 // pred_check
      _
    $region23: #{transformer_encoder.1} parent=1 // pred_check_branch
      %57 = sbr.rel (0) target = $region25
    $region24: #{transformer_encoder.1} parent=1 // pred_region
      _
    $region25: #{transformer_encoder.1} parent=1 // pred_fallthru
      _
    // Predicated region
    $region26: #{transformer_encoder.1} parent=1 // pred_check
      _
    $region27: #{transformer_encoder.1} parent=1 // pred_check_branch
      %59 = sbr.rel (0) target = $region29
    $region28: #{transformer_encoder.1} parent=1 // pred_region
      %61 = vsyncadd [#allocation6], 0
      %s62 = sshll.u32 %s6, 4
      %s63 = int_to_ptr.hbm [resolvable:$true] %s62
      %s64 = sshll.u32 [#allocation7], 4
      %s65 = int_to_ptr.vmem [resolvable:$true] %s64
      %70 = dma.hbm_to_vmem [thread:$0]  %s63, 32, %s65, [#allocation6], 16, 16, 1
    $region29: #{transformer_encoder.1} parent=1 // pred_fallthru
      _
    // Predicated region
    $region30: #{transformer_encoder.1} parent=1 // pred_check
      _
    $region31: #{transformer_encoder.1} parent=1 // pred_check_branch
      %72 = sbr.rel (0) target = $region33
    $region32: #{transformer_encoder.1} parent=1 // pred_region
      _
    $region33: #{transformer_encoder.1} parent=1 // pred_fallthru
      _
    // Predicated region
    $region34: #{transformer_encoder.1} parent=1 // pred_check
      _
    $region35: #{transformer_encoder.1} parent=1 // pred_check_branch
      %74 = sbr.rel (0) target = $region37
    $region36: #{transformer_encoder.1} parent=1 // pred_region
      _
    $region37: #{transformer_encoder.1} parent=1 // pred_fallthru
      _
    // Predicated region
    $region38: #{transformer_encoder.1} parent=1 // pred_check
      _
    $region39: #{transformer_encoder.1} parent=1 // pred_check_branch
      %76 = sbr.rel (0) target = $region41
    $region40: #{transformer_encoder.1} parent=1 // pred_region
      _
    $region41: #{transformer_encoder.1} parent=1 // pred_fallthru
      _
    // Predicated region
    $region42: #{transformer_encoder.1} parent=1 // pred_check
      _
    $region43: #{transformer_encoder.1} parent=1 // pred_check_branch
      %78 = sbr.rel (0) target = $region45
    $region44: #{transformer_encoder.1} parent=1 // pred_region
      _
    $region45: #{transformer_encoder.1} parent=1 // pred_fallthru
      _
    // Predicated region
    $region46: #{transformer_encoder.1} parent=1 // pred_check
      _
    $region47: #{transformer_encoder.1} parent=1 // pred_check_branch
      %80 = sbr.rel (0) target = $region49
    $region48: #{transformer_encoder.1} parent=1 // pred_region
      _
    $region49: #{transformer_encoder.1} parent=1 // pred_fallthru
      _
    // Predicated region
    $region50: #{transformer_encoder.1} parent=1 // pred_check
      _
    $region51: #{transformer_encoder.1} parent=1 // pred_check_branch
      %82 = sbr.rel (0) target = $region53
    $region52: #{transformer_encoder.1} parent=1 // pred_region
      %84 = vsyncadd [#allocation9], 0
      %s85 = sshll.u32 %s12, 4
      %s86 = int_to_ptr.hbm [resolvable:$true] %s85
      %s87 = sshll.u32 [#allocation8], 4
      %s88 = int_to_ptr.vmem [resolvable:$true] %s87
      %93 = dma.hbm_to_vmem [thread:$0]  %s86, 32, %s88, [#allocation9], 16, 16, 1
    $region53: #{transformer_encoder.1} parent=1 // pred_fallthru
      _
    // Predicated region
    $region54: #{transformer_encoder.1} parent=1 // pred_check
      _
    $region55: #{transformer_encoder.1} parent=1 // pred_check_branch
      %95 = sbr.rel (0) target = $region57
    $region56: #{transformer_encoder.1} parent=1 // pred_region
      _
    $region57: #{transformer_encoder.1} parent=1 // pred_fallthru
      _
    // Predicated region
    $region58: #{transformer_encoder.1} parent=1 // pred_check
      _
    $region59: #{transformer_encoder.1} parent=1 // pred_check_branch
      %97 = sbr.rel (0) target = $region61
    $region60: #{transformer_encoder.1} parent=1 // pred_region
      _
    $region61: #{transformer_encoder.1} parent=1 // pred_fallthru
      _
    // Predicated region
    $region62: #{transformer_encoder.1} parent=1 // pred_check
      _
    $region63: #{transformer_encoder.1} parent=1 // pred_check_branch
      %99 = sbr.rel (0) target = $region65
    $region64: #{transformer_encoder.1} parent=1 // pred_region
      %101 = dma.done [#allocation3], 256
    $region65: #{transformer_encoder.1} parent=1 // pred_fallthru
      _
    // Predicated region
    $region66: #{transformer_encoder.1} parent=1 // pred_check
      _
    $region67: #{transformer_encoder.1} parent=1 // pred_check_branch
      %103 = sbr.rel (0) target = $region69
    $region68: #{transformer_encoder.1} parent=1 // pred_region
      %105 = dma.done [#allocation6], 32
    $region69: #{transformer_encoder.1} parent=1 // pred_fallthru
      _
    // Predicated region
    $region70: #{transformer_encoder.1} parent=1 // pred_check
      _
    $region71: #{transformer_encoder.1} parent=1 // pred_check_branch
      %107 = sbr.rel (0) target = $region73
    $region72: #{transformer_encoder.1} parent=1 // pred_region
      %109 = dma.done [#allocation6], 32
    $region73: #{transformer_encoder.1} parent=1 // pred_fallthru
      _
    // Predicated region
    $region74: #{transformer_encoder.1} parent=1 // pred_check
      _
    $region75: #{transformer_encoder.1} parent=1 // pred_check_branch
      %111 = sbr.rel (0) target = $region77
    $region76: #{transformer_encoder.1} parent=1 // pred_region
      %113 = dma.done [#allocation9], 32
    $region77: #{transformer_encoder.1} parent=1 // pred_fallthru
      _
    %v114 = vld [vmem:[#allocation2] sm:$0xff]
    %v115 = vld [vmem:[#allocation2 + $0x8] sm:$0xff]
    %v116 = vlaneseq
    %v117 = vshrl.u32 %v116, 7
    %v118 = vadd.s32 %v117, 8
    %vm119 = vcmp.lt.s32.totalorder %v117, 0
    %v120 = vsub.s32 0, %v117
    %v121 = vsel %vm119, %v120, %v117
    %v122 = vshrl.u32 %v121, 1
    %v123 = vand.u32 %v121, 1
    %v124 = vsub.s32 0, %v123
    %v125 = vsel %vm119, %v124, %v123
    %vm126 = vcmp.lt.s32.totalorder %v118, 0
    %v127 = vsub.s32 0, %v118
    %v128 = vsel %vm126, %v127, %v118
    %v129 = vshrl.u32 %v128, 1
    %v130 = vand.u32 %v128, 1
    %v131 = vsub.s32 0, %v130
    %v132 = vsel %vm126, %v131, %v130
    %vm133 = vcmp.ne.s32.totalorder %v125, 0
    %vm134 = vcmp.ne.s32.totalorder %v132, 0
    %vm135 = vcmp.lt.s32.totalorder %v125, 0
    %vm136 = vcmp.lt.s32.totalorder %v132, 0
    %vm137 = vmand %vm135, %vm133
    %vm138 = vmand %vm136, %vm134
    %v139 = vadd.s32 %v125, 2
    %v140 = vadd.s32 %v132, 2
    %v141 = vsel %vm137, %v139, %v125
    %v142 = vsel %vm138, %v140, %v132
    %v143 = vlaneseq
    %v144 = vand.u32 %v143, 127
    %vm145 = vcmp.lt.s32.totalorder %v144, 0
    %v146 = vsub.s32 0, %v144
    %v147 = vsel %vm145, %v146, %v144
    %v148 = vshrl.u32 %v147, 1
    %v149 = vand.u32 %v147, 1
    %v150 = vsub.s32 0, %v149
    %v151 = vsel %vm145, %v150, %v149
    %vm152 = vcmp.ne.s32.totalorder %v151, 0
    %vm153 = vcmp.lt.s32.totalorder %v151, 0
    %vm154 = vmand %vm153, %vm152
    %v155 = vadd.s32 %v151, 2
    %v156 = vsel %vm154, %v155, %v151
    %vm157 = vcmp.eq.s32.totalorder %v141, %v156
    %vm158 = vcmp.eq.s32.totalorder %v142, %v156
    %v159 = vld [vmem:[%s1] sm:$0xff]
    %v160 = vld [vmem:[%s1 + $0x8] sm:$0xff]
    %v161 = vld [vmem:[%s1 + $0x10] sm:$0xff]
    %v162 = vld [vmem:[%s1 + $0x18] sm:$0xff]
    %v163 = vld [vmem:[%s2] sm:$0x1]
    %v165 = vperm.slane %v163, 0
    %vm167 = vcmask 261120
    %v169 = vsel %vm167, %v114, 0
    %v172 = vsel %vm167, %v115, 0
    %174 = vmatpush.msra.mxu0 0.0
    %175 = vmatpush.msra.mxu0 0.0
    %176 = vmatpush.msra.mxu0 0.0
    %177 = vmatpush.msra.mxu0 0.0
    %178 = vmatpush.msra.mxu0 0.0
    %179 = vmatpush.msra.mxu0 0.0
    %180 = vmatpush.msra.mxu0 0.0
    %181 = vmatpush.msra.mxu0 0.0
    %182 = vmatpush.msra.mxu0 0.0
    %183 = vmatpush.msra.mxu0 0.0
    %184 = vmatpush.msra.mxu0 0.0
    %185 = vmatpush.msra.mxu0 0.0
    %186 = vmatpush.msra.mxu0 %v162
    %187 = vmatpush.msra.mxu0 %v161
    %188 = vmatpush.msra.mxu0 %v160
    %189 = vmatpush.msra.mxu0 %v159
    %190 = vmatmul.f32.gmra.mxu0 %v169
    %v191 = vpop.f32.mrf.mxu0
    %v192 = vadd.f32 %v165, %v191
    %193 = vmatmul.f32.gmra.mxu0 %v172
    %v194 = vpop.f32.mrf.mxu0
    %v195 = vadd.f32 %v165, %v194
    %196 = vdwg.mxu0
    %v197 = vmul.f32 %v192, 0.35355338
    %v198 = vmul.f32 %v195, 0.35355338
    %v199 = vld [vmem:[%s3] sm:$0xff]
    %v200 = vld [vmem:[%s3 + $0x8] sm:$0xff]
    %v201 = vld [vmem:[%s3 + $0x10] sm:$0xff]
    %v202 = vld [vmem:[%s3 + $0x18] sm:$0xff]
    %205 = vrot.lane.b32.xlu0 %v192, 96
    %v206 = vpop.permute.xlu0 %205
    %207 = vrot.lane.b32.xlu0 %v195, 96
    %v208 = vpop.permute.xlu0 %207
    %vm209 = vcmask 64512
    %v211 = vsel %vm209, %v197, 0
    %v214 = vsel %vm209, %v198, 0
    %v216 = vsel %vm209, %v206, 0
    %v218 = vsel %vm209, %v208, 0
    %220 = vmatpush.xpose.msra.mxu0 0.0
    %221 = vmatpush.xpose.msra.mxu0 0.0
    %222 = vmatpush.xpose.msra.mxu0 0.0
    %223 = vmatpush.xpose.msra.mxu0 0.0
    %224 = vmatpush.xpose.msra.mxu0 0.0
    %225 = vmatpush.xpose.msra.mxu0 0.0
    %226 = vmatpush.xpose.msra.mxu0 0.0
    %227 = vmatpush.xpose.msra.mxu0 0.0
    %228 = vmatpush.xpose.msra.mxu0 0.0
    %229 = vmatpush.xpose.msra.mxu0 0.0
    %230 = vmatpush.xpose.msra.mxu0 0.0
    %231 = vmatpush.xpose.msra.mxu0 0.0
    %232 = vmatpush.xpose.msra.mxu0 0.0
    %233 = vmatpush.xpose.msra.mxu0 0.0
    %234 = vmatpush.xpose.msra.mxu0 %v218
    %235 = vmatpush.xpose.msra.mxu0 %v216
    %236 = vmatmul.f32.gmra.mxu0 %v211
    %v237 = vpop.f32.mrf.mxu0
    %v238 = vadd.f32 0.0, %v237
    %239 = vmatmul.f32.gmra.mxu0 %v214
    %v240 = vpop.f32.mrf.mxu0
    %v241 = vadd.f32 0.0, %v240
    %242 = vdwg.mxu0
    %v243 = vsel %vm157, %v238, -1e+30
    %v244 = vsel %vm158, %v241, -1e+30
    %vm245 = vcmask 130048
    %v246 = vsel %vm245, %v243, -inf
    %247 = vmax.xlane.f32.xlu0 %v246
    %v248 = vpop.xlane.xlu0 %247
    %v249 = vsel %vm245, %v244, -inf
    %250 = vmax.xlane.f32.xlu0 %v249
    %v251 = vpop.xlane.xlu0 %250
    %v252 = vsub.f32 %v243, %v248
    %v253 = vsub.f32 %v244, %v251
    %v254 = vmul.f32 %v252, 1.442695
    %v255 = vpow.pop %v254
    %v256 = vmul.f32 %v253, 1.442695
    %v257 = vpow.pop %v256
    %v258 = vsel %vm245, %v255, 0.0
    %259 = vadd.xlane.f32.xlu0 %v258
    %v260 = vpop.xlane.xlu0 %259
    %v261 = vsel %vm245, %v257, 0.0
    %262 = vadd.xlane.f32.xlu0 %v261
    %v263 = vpop.xlane.xlu0 %262
    %v264 = vrcp.pop %v260
    %v265 = vmul.f32 %v260, %v264
    %v266 = vsub.f32 1.0, %v265
    %v267 = vmul.f32 %v264, %v266
    %v268 = vadd.f32 %v264, %v267
    %vm269 = vweird.f32 %v260
    %vm270 = vweird.f32 %v264
    %vm271 = vmor %vm269, %vm270
    %v272 = vsel %vm271, %v264, %v268
    %v273 = vand.u32 2147483647, %v260
    %vm274 = vcmp.eq.f32.partialorder %v273, 8.507059e+37
    %v275 = vand.u32 %v260, 2147483648
    %v276 = vor.u32 1.1754944e-38, %v275
    %v277 = vsel %vm274, %v276, %v272
    %v278 = vrcp.pop %v263
    %v279 = vmul.f32 %v263, %v278
    %v280 = vsub.f32 1.0, %v279
    %v281 = vmul.f32 %v278, %v280
    %v282 = vadd.f32 %v278, %v281
    %vm283 = vweird.f32 %v263
    %vm284 = vweird.f32 %v278
    %vm285 = vmor %vm283, %vm284
    %v286 = vsel %vm285, %v278, %v282
    %v287 = vand.u32 2147483647, %v263
    %vm288 = vcmp.eq.f32.partialorder %v287, 8.507059e+37
    %v289 = vand.u32 %v263, 2147483648
    %v290 = vor.u32 1.1754944e-38, %v289
    %v291 = vsel %vm288, %v290, %v286
    %v292 = vmul.f32 %v255, %v277
    %v293 = vmul.f32 %v257, %v291
    %294 = vrot.lane.b32.xlu0 %v192, 64
    %v295 = vpop.permute.xlu0 %294
    %296 = vrot.lane.b32.xlu0 %v195, 64
    %v297 = vpop.permute.xlu0 %296
    %v301 = vsel %vm245, %v292, 0
    %v304 = vsel %vm245, %v293, 0
    %306 = vmatpush.msra.mxu0 0.0
    %307 = vmatpush.msra.mxu0 0.0
    %308 = vmatpush.msra.mxu0 0.0
    %309 = vmatpush.msra.mxu0 0.0
    %310 = vmatpush.msra.mxu0 0.0
    %311 = vmatpush.msra.mxu0 0.0
    %312 = vmatpush.msra.mxu0 0.0
    %313 = vmatpush.msra.mxu0 0.0
    %314 = vmatpush.msra.mxu0 0.0
    %315 = vmatpush.msra.mxu0 0.0
    %316 = vmatpush.msra.mxu0 0.0
    %317 = vmatpush.msra.mxu0 0.0
    %318 = vmatpush.msra.mxu0 0.0
    %319 = vmatpush.msra.mxu0 0.0
    %320 = vmatpush.msra.mxu0 %v297
    %321 = vmatpush.msra.mxu0 %v295
    %322 = vmatmul.f32.gmra.mxu0 %v301
    %v323 = vpop.f32.mrf.mxu0
    %v324 = vadd.f32 0.0, %v323
    %325 = vmatmul.f32.gmra.mxu0 %v304
    %v326 = vpop.f32.mrf.mxu0
    %v327 = vadd.f32 0.0, %v326
    %328 = vdwg.mxu0
    %329 = vrot.lane.b32.xlu0 %v197, 120
    %v330 = vpop.permute.xlu0 %329
    %331 = vrot.lane.b32.xlu0 %v198, 120
    %v332 = vpop.permute.xlu0 %331
    %333 = vrot.lane.b32.xlu0 %v192, 88
    %v334 = vpop.permute.xlu0 %333
    %335 = vrot.lane.b32.xlu0 %v195, 88
    %v336 = vpop.permute.xlu0 %335
    %v337 = vsel %vm209, %v330, 0
    %v339 = vsel %vm209, %v332, 0
    %v341 = vsel %vm209, %v334, 0
    %v343 = vsel %vm209, %v336, 0
    %345 = vmatpush.xpose.msra.mxu0 0.0
    %346 = vmatpush.xpose.msra.mxu0 0.0
    %347 = vmatpush.xpose.msra.mxu0 0.0
    %348 = vmatpush.xpose.msra.mxu0 0.0
    %349 = vmatpush.xpose.msra.mxu0 0.0
    %350 = vmatpush.xpose.msra.mxu0 0.0
    %351 = vmatpush.xpose.msra.mxu0 0.0
    %352 = vmatpush.xpose.msra.mxu0 0.0
    %353 = vmatpush.xpose.msra.mxu0 0.0
    %354 = vmatpush.xpose.msra.mxu0 0.0
    %355 = vmatpush.xpose.msra.mxu0 0.0
    %356 = vmatpush.xpose.msra.mxu0 0.0
    %357 = vmatpush.xpose.msra.mxu0 0.0
    %358 = vmatpush.xpose.msra.mxu0 0.0
    %359 = vmatpush.xpose.msra.mxu0 %v343
    %360 = vmatpush.xpose.msra.mxu0 %v341
    %361 = vmatmul.f32.gmra.mxu0 %v337
    %v362 = vpop.f32.mrf.mxu0
    %v363 = vadd.f32 0.0, %v362
    %364 = vmatmul.f32.gmra.mxu0 %v339
    %v365 = vpop.f32.mrf.mxu0
    %v366 = vadd.f32 0.0, %v365
    %367 = vdwg.mxu0
    %v368 = vsel %vm157, %v363, -1e+30
    %v369 = vsel %vm158, %v366, -1e+30
    %v370 = vsel %vm245, %v368, -inf
    %371 = vmax.xlane.f32.xlu0 %v370
    %v372 = vpop.xlane.xlu0 %371
    %v373 = vsel %vm245, %v369, -inf
    %374 = vmax.xlane.f32.xlu0 %v373
    %v375 = vpop.xlane.xlu0 %374
    %v376 = vsub.f32 %v368, %v372
    %v377 = vsub.f32 %v369, %v375
    %v378 = vmul.f32 %v376, 1.442695
    %v379 = vpow.pop %v378
    %v380 = vmul.f32 %v377, 1.442695
    %v381 = vpow.pop %v380
    %v382 = vsel %vm245, %v379, 0.0
    %383 = vadd.xlane.f32.xlu0 %v382
    %v384 = vpop.xlane.xlu0 %383
    %v385 = vsel %vm245, %v381, 0.0
    %386 = vadd.xlane.f32.xlu0 %v385
    %v387 = vpop.xlane.xlu0 %386
    %v388 = vrcp.pop %v384
    %v389 = vmul.f32 %v384, %v388
    %v390 = vsub.f32 1.0, %v389
    %v391 = vmul.f32 %v388, %v390
    %v392 = vadd.f32 %v388, %v391
    %vm393 = vweird.f32 %v384
    %vm394 = vweird.f32 %v388
    %vm395 = vmor %vm393, %vm394
    %v396 = vsel %vm395, %v388, %v392
    %v397 = vand.u32 2147483647, %v384
    %vm398 = vcmp.eq.f32.partialorder %v397, 8.507059e+37
    %v399 = vand.u32 %v384, 2147483648
    %v400 = vor.u32 1.1754944e-38, %v399
    %v401 = vsel %vm398, %v400, %v396
    %v402 = vrcp.pop %v387
    %v403 = vmul.f32 %v387, %v402
    %v404 = vsub.f32 1.0, %v403
    %v405 = vmul.f32 %v402, %v404
    %v406 = vadd.f32 %v402, %v405
    %vm407 = vweird.f32 %v387
    %vm408 = vweird.f32 %v402
    %vm409 = vmor %vm407, %vm408
    %v410 = vsel %vm409, %v402, %v406
    %v411 = vand.u32 2147483647, %v387
    %vm412 = vcmp.eq.f32.partialorder %v411, 8.507059e+37
    %v413 = vand.u32 %v387, 2147483648
    %v414 = vor.u32 1.1754944e-38, %v413
    %v415 = vsel %vm412, %v414, %v410
    %v416 = vmul.f32 %v379, %v401
    %v417 = vmul.f32 %v381, %v415
    %418 = vrot.lane.b32.xlu0 %v192, 56
    %v419 = vpop.permute.xlu0 %418
    %420 = vrot.lane.b32.xlu0 %v195, 56
    %v421 = vpop.permute.xlu0 %420
    %v425 = vsel %vm245, %v416, 0
    %v428 = vsel %vm245, %v417, 0
    %430 = vmatpush.msra.mxu0 0.0
    %431 = vmatpush.msra.mxu0 0.0
    %432 = vmatpush.msra.mxu0 0.0
    %433 = vmatpush.msra.mxu0 0.0
    %434 = vmatpush.msra.mxu0 0.0
    %435 = vmatpush.msra.mxu0 0.0
    %436 = vmatpush.msra.mxu0 0.0
    %437 = vmatpush.msra.mxu0 0.0
    %438 = vmatpush.msra.mxu0 0.0
    %439 = vmatpush.msra.mxu0 0.0
    %440 = vmatpush.msra.mxu0 0.0
    %441 = vmatpush.msra.mxu0 0.0
    %442 = vmatpush.msra.mxu0 0.0
    %443 = vmatpush.msra.mxu0 0.0
    %444 = vmatpush.msra.mxu0 %v421
    %445 = vmatpush.msra.mxu0 %v419
    %446 = vmatmul.f32.gmra.mxu0 %v425
    %v447 = vpop.f32.mrf.mxu0
    %v448 = vadd.f32 0.0, %v447
    %449 = vmatmul.f32.gmra.mxu0 %v428
    %v450 = vpop.f32.mrf.mxu0
    %v451 = vadd.f32 0.0, %v450
    %452 = vdwg.mxu0
    %v454 = vsel %vm209, %v448, 0
    %v457 = vsel %vm209, %v451, 0
    %459 = vmatpush.msra.mxu0 0.0
    %460 = vmatpush.msra.mxu0 0.0
    %461 = vmatpush.msra.mxu0 0.0
    %462 = vmatpush.msra.mxu0 0.0
    %463 = vmatpush.msra.mxu0 0.0
    %464 = vmatpush.msra.mxu0 0.0
    %465 = vmatpush.msra.mxu0 0.0
    %466 = vmatpush.msra.mxu0 0.0
    %467 = vmatpush.msra.mxu0 0.0
    %468 = vmatpush.msra.mxu0 0.0
    %469 = vmatpush.msra.mxu0 0.0
    %470 = vmatpush.msra.mxu0 0.0
    %471 = vmatpush.msra.mxu0 0.0
    %472 = vmatpush.msra.mxu0 0.0
    %473 = vmatpush.msra.mxu0 0.0
    %474 = vmatpush.msra.mxu0 %v200
    %475 = vmatmul.f32.gmra.mxu0 %v454
    %v476 = vpop.f32.mrf.mxu0
    %v477 = vadd.f32 0.0, %v476
    %478 = vmatmul.f32.gmra.mxu0 %v457
    %v479 = vpop.f32.mrf.mxu0
    %v480 = vadd.f32 0.0, %v479
    %481 = vdwg.mxu0
    %v483 = vsel %vm209, %v324, 0
    %v486 = vsel %vm209, %v327, 0
    %488 = vmatpush.msra.mxu0 0.0
    %489 = vmatpush.msra.mxu0 0.0
    %490 = vmatpush.msra.mxu0 0.0
    %491 = vmatpush.msra.mxu0 0.0
    %492 = vmatpush.msra.mxu0 0.0
    %493 = vmatpush.msra.mxu0 0.0
    %494 = vmatpush.msra.mxu0 0.0
    %495 = vmatpush.msra.mxu0 0.0
    %496 = vmatpush.msra.mxu0 0.0
    %497 = vmatpush.msra.mxu0 0.0
    %498 = vmatpush.msra.mxu0 0.0
    %499 = vmatpush.msra.mxu0 0.0
    %500 = vmatpush.msra.mxu0 0.0
    %501 = vmatpush.msra.mxu0 0.0
    %502 = vmatpush.msra.mxu0 0.0
    %503 = vmatpush.msra.mxu0 %v199
    %504 = vmatmul.f32.gmra.mxu0 %v483
    %v505 = vpop.f32.mrf.mxu0
    %v506 = vadd.f32 %v477, %v505
    %507 = vmatmul.f32.gmra.mxu0 %v486
    %v508 = vpop.f32.mrf.mxu0
    %v509 = vadd.f32 %v480, %v508
    %510 = vdwg.mxu0
    %511 = vrot.lane.b32.xlu0 %v197, 112
    %v512 = vpop.permute.xlu0 %511
    %513 = vrot.lane.b32.xlu0 %v198, 112
    %v514 = vpop.permute.xlu0 %513
    %515 = vrot.lane.b32.xlu0 %v192, 80
    %v516 = vpop.permute.xlu0 %515
    %517 = vrot.lane.b32.xlu0 %v195, 80
    %v518 = vpop.permute.xlu0 %517
    %v519 = vsel %vm209, %v512, 0
    %v521 = vsel %vm209, %v514, 0
    %v523 = vsel %vm209, %v516, 0
    %v525 = vsel %vm209, %v518, 0
    %527 = vmatpush.xpose.msra.mxu0 0.0
    %528 = vmatpush.xpose.msra.mxu0 0.0
    %529 = vmatpush.xpose.msra.mxu0 0.0
    %530 = vmatpush.xpose.msra.mxu0 0.0
    %531 = vmatpush.xpose.msra.mxu0 0.0
    %532 = vmatpush.xpose.msra.mxu0 0.0
    %533 = vmatpush.xpose.msra.mxu0 0.0
    %534 = vmatpush.xpose.msra.mxu0 0.0
    %535 = vmatpush.xpose.msra.mxu0 0.0
    %536 = vmatpush.xpose.msra.mxu0 0.0
    %537 = vmatpush.xpose.msra.mxu0 0.0
    %538 = vmatpush.xpose.msra.mxu0 0.0
    %539 = vmatpush.xpose.msra.mxu0 0.0
    %540 = vmatpush.xpose.msra.mxu0 0.0
    %541 = vmatpush.xpose.msra.mxu0 %v525
    %542 = vmatpush.xpose.msra.mxu0 %v523
    %543 = vmatmul.f32.gmra.mxu0 %v519
    %v544 = vpop.f32.mrf.mxu0
    %v545 = vadd.f32 0.0, %v544
    %546 = vmatmul.f32.gmra.mxu0 %v521
    %v547 = vpop.f32.mrf.mxu0
    %v548 = vadd.f32 0.0, %v547
    %549 = vdwg.mxu0
    %v550 = vsel %vm157, %v545, -1e+30
    %v551 = vsel %vm158, %v548, -1e+30
    %v552 = vsel %vm245, %v550, -inf
    %553 = vmax.xlane.f32.xlu0 %v552
    %v554 = vpop.xlane.xlu0 %553
    %v555 = vsel %vm245, %v551, -inf
    %556 = vmax.xlane.f32.xlu0 %v555
    %v557 = vpop.xlane.xlu0 %556
    %v558 = vsub.f32 %v550, %v554
    %v559 = vsub.f32 %v551, %v557
    %v560 = vmul.f32 %v558, 1.442695
    %v561 = vpow.pop %v560
    %v562 = vmul.f32 %v559, 1.442695
    %v563 = vpow.pop %v562
    %v564 = vsel %vm245, %v561, 0.0
    %565 = vadd.xlane.f32.xlu0 %v564
    %v566 = vpop.xlane.xlu0 %565
    %v567 = vsel %vm245, %v563, 0.0
    %568 = vadd.xlane.f32.xlu0 %v567
    %v569 = vpop.xlane.xlu0 %568
    %v570 = vrcp.pop %v566
    %v571 = vmul.f32 %v566, %v570
    %v572 = vsub.f32 1.0, %v571
    %v573 = vmul.f32 %v570, %v572
    %v574 = vadd.f32 %v570, %v573
    %vm575 = vweird.f32 %v566
    %vm576 = vweird.f32 %v570
    %vm577 = vmor %vm575, %vm576
    %v578 = vsel %vm577, %v570, %v574
    %v579 = vand.u32 2147483647, %v566
    %vm580 = vcmp.eq.f32.partialorder %v579, 8.507059e+37
    %v581 = vand.u32 %v566, 2147483648
    %v582 = vor.u32 1.1754944e-38, %v581
    %v583 = vsel %vm580, %v582, %v578
    %v584 = vrcp.pop %v569
    %v585 = vmul.f32 %v569, %v584
    %v586 = vsub.f32 1.0, %v585
    %v587 = vmul.f32 %v584, %v586
    %v588 = vadd.f32 %v584, %v587
    %vm589 = vweird.f32 %v569
    %vm590 = vweird.f32 %v584
    %vm591 = vmor %vm589, %vm590
    %v592 = vsel %vm591, %v584, %v588
    %v593 = vand.u32 2147483647, %v569
    %vm594 = vcmp.eq.f32.partialorder %v593, 8.507059e+37
    %v595 = vand.u32 %v569, 2147483648
    %v596 = vor.u32 1.1754944e-38, %v595
    %v597 = vsel %vm594, %v596, %v592
    %v598 = vmul.f32 %v561, %v583
    %v599 = vmul.f32 %v563, %v597
    %600 = vrot.lane.b32.xlu0 %v192, 48
    %v601 = vpop.permute.xlu0 %600
    %602 = vrot.lane.b32.xlu0 %v195, 48
    %v603 = vpop.permute.xlu0 %602
    %v607 = vsel %vm245, %v598, 0
    %v610 = vsel %vm245, %v599, 0
    %612 = vmatpush.msra.mxu0 0.0
    %613 = vmatpush.msra.mxu0 0.0
    %614 = vmatpush.msra.mxu0 0.0
    %615 = vmatpush.msra.mxu0 0.0
    %616 = vmatpush.msra.mxu0 0.0
    %617 = vmatpush.msra.mxu0 0.0
    %618 = vmatpush.msra.mxu0 0.0
    %619 = vmatpush.msra.mxu0 0.0
    %620 = vmatpush.msra.mxu0 0.0
    %621 = vmatpush.msra.mxu0 0.0
    %622 = vmatpush.msra.mxu0 0.0
    %623 = vmatpush.msra.mxu0 0.0
    %624 = vmatpush.msra.mxu0 0.0
    %625 = vmatpush.msra.mxu0 0.0
    %626 = vmatpush.msra.mxu0 %v603
    %627 = vmatpush.msra.mxu0 %v601
    %628 = vmatmul.f32.gmra.mxu0 %v607
    %v629 = vpop.f32.mrf.mxu0
    %v630 = vadd.f32 0.0, %v629
    %631 = vmatmul.f32.gmra.mxu0 %v610
    %v632 = vpop.f32.mrf.mxu0
    %v633 = vadd.f32 0.0, %v632
    %634 = vdwg.mxu0
    %v636 = vsel %vm209, %v630, 0
    %v639 = vsel %vm209, %v633, 0
    %641 = vmatpush.msra.mxu0 0.0
    %642 = vmatpush.msra.mxu0 0.0
    %643 = vmatpush.msra.mxu0 0.0
    %644 = vmatpush.msra.mxu0 0.0
    %645 = vmatpush.msra.mxu0 0.0
    %646 = vmatpush.msra.mxu0 0.0
    %647 = vmatpush.msra.mxu0 0.0
    %648 = vmatpush.msra.mxu0 0.0
    %649 = vmatpush.msra.mxu0 0.0
    %650 = vmatpush.msra.mxu0 0.0
    %651 = vmatpush.msra.mxu0 0.0
    %652 = vmatpush.msra.mxu0 0.0
    %653 = vmatpush.msra.mxu0 0.0
    %654 = vmatpush.msra.mxu0 0.0
    %655 = vmatpush.msra.mxu0 0.0
    %656 = vmatpush.msra.mxu0 %v201
    %657 = vmatmul.f32.gmra.mxu0 %v636
    %v658 = vpop.f32.mrf.mxu0
    %v659 = vadd.f32 0.0, %v658
    %660 = vmatmul.f32.gmra.mxu0 %v639
    %v661 = vpop.f32.mrf.mxu0
    %v662 = vadd.f32 0.0, %v661
    %663 = vdwg.mxu0
    %v664 = vadd.f32 %v506, %v659
    %v665 = vadd.f32 %v509, %v662
    %666 = vrot.lane.b32.xlu0 %v197, 104
    %v667 = vpop.permute.xlu0 %666
    %668 = vrot.lane.b32.xlu0 %v198, 104
    %v669 = vpop.permute.xlu0 %668
    %670 = vrot.lane.b32.xlu0 %v192, 72
    %v671 = vpop.permute.xlu0 %670
    %672 = vrot.lane.b32.xlu0 %v195, 72
    %v673 = vpop.permute.xlu0 %672
    %v674 = vsel %vm209, %v667, 0
    %v676 = vsel %vm209, %v669, 0
    %v678 = vsel %vm209, %v671, 0
    %v680 = vsel %vm209, %v673, 0
    %682 = vmatpush.xpose.msra.mxu0 0.0
    %683 = vmatpush.xpose.msra.mxu0 0.0
    %684 = vmatpush.xpose.msra.mxu0 0.0
    %685 = vmatpush.xpose.msra.mxu0 0.0
    %686 = vmatpush.xpose.msra.mxu0 0.0
    %687 = vmatpush.xpose.msra.mxu0 0.0
    %688 = vmatpush.xpose.msra.mxu0 0.0
    %689 = vmatpush.xpose.msra.mxu0 0.0
    %690 = vmatpush.xpose.msra.mxu0 0.0
    %691 = vmatpush.xpose.msra.mxu0 0.0
    %692 = vmatpush.xpose.msra.mxu0 0.0
    %693 = vmatpush.xpose.msra.mxu0 0.0
    %694 = vmatpush.xpose.msra.mxu0 0.0
    %695 = vmatpush.xpose.msra.mxu0 0.0
    %696 = vmatpush.xpose.msra.mxu0 %v680
    %697 = vmatpush.xpose.msra.mxu0 %v678
    %698 = vmatmul.f32.gmra.mxu0 %v674
    %v699 = vpop.f32.mrf.mxu0
    %v700 = vadd.f32 0.0, %v699
    %701 = vmatmul.f32.gmra.mxu0 %v676
    %v702 = vpop.f32.mrf.mxu0
    %v703 = vadd.f32 0.0, %v702
    %704 = vdwg.mxu0
    %v705 = vsel %vm157, %v700, -1e+30
    %v706 = vsel %vm158, %v703, -1e+30
    %v707 = vsel %vm245, %v705, -inf
    %708 = vmax.xlane.f32.xlu0 %v707
    %v709 = vpop.xlane.xlu0 %708
    %v710 = vsel %vm245, %v706, -inf
    %711 = vmax.xlane.f32.xlu0 %v710
    %v712 = vpop.xlane.xlu0 %711
    %v713 = vsub.f32 %v705, %v709
    %v714 = vsub.f32 %v706, %v712
    %v715 = vmul.f32 %v713, 1.442695
    %v716 = vpow.pop %v715
    %v717 = vmul.f32 %v714, 1.442695
    %v718 = vpow.pop %v717
    %v719 = vsel %vm245, %v716, 0.0
    %720 = vadd.xlane.f32.xlu0 %v719
    %v721 = vpop.xlane.xlu0 %720
    %v722 = vsel %vm245, %v718, 0.0
    %723 = vadd.xlane.f32.xlu0 %v722
    %v724 = vpop.xlane.xlu0 %723
    %v725 = vrcp.pop %v721
    %v726 = vmul.f32 %v721, %v725
    %v727 = vsub.f32 1.0, %v726
    %v728 = vmul.f32 %v725, %v727
    %v729 = vadd.f32 %v725, %v728
    %vm730 = vweird.f32 %v721
    %vm731 = vweird.f32 %v725
    %vm732 = vmor %vm730, %vm731
    %v733 = vsel %vm732, %v725, %v729
    %v734 = vand.u32 2147483647, %v721
    %vm735 = vcmp.eq.f32.partialorder %v734, 8.507059e+37
    %v736 = vand.u32 %v721, 2147483648
    %v737 = vor.u32 1.1754944e-38, %v736
    %v738 = vsel %vm735, %v737, %v733
    %v739 = vrcp.pop %v724
    %v740 = vmul.f32 %v724, %v739
    %v741 = vsub.f32 1.0, %v740
    %v742 = vmul.f32 %v739, %v741
    %v743 = vadd.f32 %v739, %v742
    %vm744 = vweird.f32 %v724
    %vm745 = vweird.f32 %v739
    %vm746 = vmor %vm744, %vm745
    %v747 = vsel %vm746, %v739, %v743
    %v748 = vand.u32 2147483647, %v724
    %vm749 = vcmp.eq.f32.partialorder %v748, 8.507059e+37
    %v750 = vand.u32 %v724, 2147483648
    %v751 = vor.u32 1.1754944e-38, %v750
    %v752 = vsel %vm749, %v751, %v747
    %v753 = vmul.f32 %v716, %v738
    %v754 = vmul.f32 %v718, %v752
    %755 = vrot.lane.b32.xlu0 %v192, 40
    %v756 = vpop.permute.xlu0 %755
    %757 = vrot.lane.b32.xlu0 %v195, 40
    %v758 = vpop.permute.xlu0 %757
    %v762 = vsel %vm245, %v753, 0
    %v765 = vsel %vm245, %v754, 0
    %767 = vmatpush.msra.mxu0 0.0
    %768 = vmatpush.msra.mxu0 0.0
    %769 = vmatpush.msra.mxu0 0.0
    %770 = vmatpush.msra.mxu0 0.0
    %771 = vmatpush.msra.mxu0 0.0
    %772 = vmatpush.msra.mxu0 0.0
    %773 = vmatpush.msra.mxu0 0.0
    %774 = vmatpush.msra.mxu0 0.0
    %775 = vmatpush.msra.mxu0 0.0
    %776 = vmatpush.msra.mxu0 0.0
    %777 = vmatpush.msra.mxu0 0.0
    %778 = vmatpush.msra.mxu0 0.0
    %779 = vmatpush.msra.mxu0 0.0
    %780 = vmatpush.msra.mxu0 0.0
    %781 = vmatpush.msra.mxu0 %v758
    %782 = vmatpush.msra.mxu0 %v756
    %783 = vmatmul.f32.gmra.mxu0 %v762
    %v784 = vpop.f32.mrf.mxu0
    %v785 = vadd.f32 0.0, %v784
    %786 = vmatmul.f32.gmra.mxu0 %v765
    %v787 = vpop.f32.mrf.mxu0
    %v788 = vadd.f32 0.0, %v787
    %789 = vdwg.mxu0
    %v791 = vsel %vm209, %v785, 0
    %v794 = vsel %vm209, %v788, 0
    %796 = vmatpush.msra.mxu0 0.0
    %797 = vmatpush.msra.mxu0 0.0
    %798 = vmatpush.msra.mxu0 0.0
    %799 = vmatpush.msra.mxu0 0.0
    %800 = vmatpush.msra.mxu0 0.0
    %801 = vmatpush.msra.mxu0 0.0
    %802 = vmatpush.msra.mxu0 0.0
    %803 = vmatpush.msra.mxu0 0.0
    %804 = vmatpush.msra.mxu0 0.0
    %805 = vmatpush.msra.mxu0 0.0
    %806 = vmatpush.msra.mxu0 0.0
    %807 = vmatpush.msra.mxu0 0.0
    %808 = vmatpush.msra.mxu0 0.0
    %809 = vmatpush.msra.mxu0 0.0
    %810 = vmatpush.msra.mxu0 0.0
    %811 = vmatpush.msra.mxu0 %v202
    %812 = vmatmul.f32.gmra.mxu0 %v791
    %v813 = vpop.f32.mrf.mxu0
    %v814 = vadd.f32 0.0, %v813
    %815 = vmatmul.f32.gmra.mxu0 %v794
    %v816 = vpop.f32.mrf.mxu0
    %v817 = vadd.f32 0.0, %v816
    %818 = vdwg.mxu0
    %v819 = vadd.f32 %v664, %v814
    %v820 = vadd.f32 %v665, %v817
    %v821 = vld [vmem:[#allocation5] sm:$0x1]
    %v823 = vperm.slane %v821, 0
    %v825 = vadd.f32 %v819, %v823
    %v826 = vadd.f32 %v820, %v823
    %v827 = vadd.f32 %v114, %v825
    %v828 = vadd.f32 %v115, %v826
    %v829 = vld [vmem:[%s5] sm:$0x1]
    %v830 = vld [vmem:[#allocation7] sm:$0x1]
    %v831 = vsel %vm167, %v827, 0.0
    %832 = vadd.xlane.f32.xlu0 %v831
    %v833 = vpop.xlane.xlu0 %832
    %v834 = vsel %vm167, %v828, 0.0
    %835 = vadd.xlane.f32.xlu0 %v834
    %v836 = vpop.xlane.xlu0 %835
    %v837 = vrcp.pop 32.0
    %v838 = vmul.f32 32.0, %v837
    %v839 = vsub.f32 1.0, %v838
    %v840 = vmul.f32 %v837, %v839
    %v841 = vadd.f32 %v837, %v840
    %vm842 = vweird.f32 %v837
    %v843 = vsel %vm842, %v837, %v841
    %v844 = vmul.f32 %v833, %v843
    %v845 = vmul.f32 %v836, %v843
    %v846 = vsub.f32 %v827, %v844
    %v847 = vsub.f32 %v828, %v845
    %v848 = vmul.f32 %v846, %v846
    %v849 = vmul.f32 %v847, %v847
    %v850 = vsel %vm167, %v848, 0.0
    %851 = vadd.xlane.f32.xlu0 %v850
    %v852 = vpop.xlane.xlu0 %851
    %v853 = vsel %vm167, %v849, 0.0
    %854 = vadd.xlane.f32.xlu0 %v853
    %v855 = vpop.xlane.xlu0 %854
    %v856 = vmul.f32 %v852, %v843
    %v857 = vmul.f32 %v855, %v843
    %v858 = vadd.f32 %v856, 1e-05
    %v859 = vadd.f32 %v857, 1e-05
    %v860 = vrsqrt.pop %v858
    %v861 = vmul.f32 %v860, %v858
    %v862 = vmul.f32 %v861, %v860
    %v863 = vmul.f32 0.5, %v862
    %v864 = vsub.f32 1.5, %v863
    %v865 = vmul.f32 %v860, %v864
    %vm866 = vweird.f32 %v858
    %vm867 = vweird.f32 %v860
    %vm868 = vmor %vm866, %vm867
    %v869 = vsel %vm868, %v860, %v865
    %v870 = vrsqrt.pop %v859
    %v871 = vmul.f32 %v870, %v859
    %v872 = vmul.f32 %v871, %v870
    %v873 = vmul.f32 0.5, %v872
    %v874 = vsub.f32 1.5, %v873
    %v875 = vmul.f32 %v870, %v874
    %vm876 = vweird.f32 %v859
    %vm877 = vweird.f32 %v870
    %vm878 = vmor %vm876, %vm877
    %v879 = vsel %vm878, %v870, %v875
    %v880 = vmul.f32 %v846, %v869
    %v881 = vmul.f32 %v847, %v879
    %v883 = vperm.slane %v829, 0
    %v885 = vmul.f32 %v880, %v883
    %v886 = vmul.f32 %v881, %v883
    %v888 = vperm.slane %v830, 0
    %v890 = vadd.f32 %v885, %v888
    %v891 = vadd.f32 %v886, %v888
    %v892 = vld [vmem:[%s7] sm:$0xff]
    %v893 = vld [vmem:[%s7 + $0x8] sm:$0xff]
    %v894 = vld [vmem:[%s7 + $0x10] sm:$0xff]
    %v895 = vld [vmem:[%s7 + $0x18] sm:$0xff]
    %v896 = vld [vmem:[%s8] sm:$0x1]
    %v898 = vperm.slane %v896, 0
    %v901 = vsel %vm167, %v890, 0
    %v904 = vsel %vm167, %v891, 0
    %906 = vmatpush.msra.mxu0 0.0
    %907 = vmatpush.msra.mxu0 0.0
    %908 = vmatpush.msra.mxu0 0.0
    %909 = vmatpush.msra.mxu0 0.0
    %910 = vmatpush.msra.mxu0 0.0
    %911 = vmatpush.msra.mxu0 0.0
    %912 = vmatpush.msra.mxu0 0.0
    %913 = vmatpush.msra.mxu0 0.0
    %914 = vmatpush.msra.mxu0 0.0
    %915 = vmatpush.msra.mxu0 0.0
    %916 = vmatpush.msra.mxu0 0.0
    %917 = vmatpush.msra.mxu0 0.0
    %918 = vmatpush.msra.mxu0 %v895
    %919 = vmatpush.msra.mxu0 %v894
    %920 = vmatpush.msra.mxu0 %v893
    %921 = vmatpush.msra.mxu0 %v892
    %922 = vmatmul.f32.gmra.mxu0 %v901
    %v923 = vpop.f32.mrf.mxu0
    %v924 = vadd.f32 %v898, %v923
    %925 = vmatmul.f32.gmra.mxu0 %v904
    %v926 = vpop.f32.mrf.mxu0
    %v927 = vadd.f32 %v898, %v926
    %928 = vdwg.mxu0
    %v929 = vmax.f32 %v924, 0.0
    %v930 = vmax.f32 %v927, 0.0
    %v931 = vld [vmem:[%s9] sm:$0xff]
    %v932 = vld [vmem:[%s9 + $0x8] sm:$0xff]
    %v933 = vld [vmem:[%s9 + $0x10] sm:$0xff]
    %v934 = vld [vmem:[%s9 + $0x18] sm:$0xff]
    %v935 = vld [vmem:[%s9 + $0x20] sm:$0xff]
    %v936 = vld [vmem:[%s9 + $0x28] sm:$0xff]
    %v937 = vld [vmem:[%s9 + $0x30] sm:$0xff]
    %v938 = vld [vmem:[%s9 + $0x38] sm:$0xff]
    %v939 = vld [vmem:[%s10] sm:$0x1]
    %v941 = vperm.slane %v939, 0
    %vm943 = vcmask 523264
    %v945 = vsel %vm943, %v929, 0
    %v948 = vsel %vm943, %v930, 0
    %950 = vmatpush.msra.mxu0 0.0
    %951 = vmatpush.msra.mxu0 0.0
    %952 = vmatpush.msra.mxu0 0.0
    %953 = vmatpush.msra.mxu0 0.0
    %954 = vmatpush.msra.mxu0 0.0
    %955 = vmatpush.msra.mxu0 0.0
    %956 = vmatpush.msra.mxu0 0.0
    %957 = vmatpush.msra.mxu0 0.0
    %958 = vmatpush.msra.mxu0 %v938
    %959 = vmatpush.msra.mxu0 %v937
    %960 = vmatpush.msra.mxu0 %v936
    %961 = vmatpush.msra.mxu0 %v935
    %962 = vmatpush.msra.mxu0 %v934
    %963 = vmatpush.msra.mxu0 %v933
    %964 = vmatpush.msra.mxu0 %v932
    %965 = vmatpush.msra.mxu0 %v931
    %966 = vmatmul.f32.gmra.mxu0 %v945
    %v967 = vpop.f32.mrf.mxu0
    %v968 = vadd.f32 %v941, %v967
    %969 = vmatmul.f32.gmra.mxu0 %v948
    %v970 = vpop.f32.mrf.mxu0
    %v971 = vadd.f32 %v941, %v970
    %972 = vdwg.mxu0
    %v973 = vadd.f32 %v890, %v968
    %v974 = vadd.f32 %v891, %v971
    %v975 = vld [vmem:[%s11] sm:$0x1]
    %v976 = vld [vmem:[#allocation8] sm:$0x1]
    %v977 = vsel %vm167, %v973, 0.0
    %978 = vadd.xlane.f32.xlu0 %v977
    %v979 = vpop.xlane.xlu0 %978
    %v980 = vsel %vm167, %v974, 0.0
    %981 = vadd.xlane.f32.xlu0 %v980
    %v982 = vpop.xlane.xlu0 %981
    %v983 = vmul.f32 %v979, %v843
    %v984 = vmul.f32 %v982, %v843
    %v985 = vsub.f32 %v973, %v983
    %v986 = vsub.f32 %v974, %v984
    %v987 = vmul.f32 %v985, %v985
    %v988 = vmul.f32 %v986, %v986
    %v989 = vsel %vm167, %v987, 0.0
    %990 = vadd.xlane.f32.xlu0 %v989
    %v991 = vpop.xlane.xlu0 %990
    %v992 = vsel %vm167, %v988, 0.0
    %993 = vadd.xlane.f32.xlu0 %v992
    %v994 = vpop.xlane.xlu0 %993
    %v995 = vmul.f32 %v991, %v843
    %v996 = vmul.f32 %v994, %v843
    %v997 = vadd.f32 %v995, 1e-05
    %v998 = vadd.f32 %v996, 1e-05
    %v999 = vrsqrt.pop %v997
    %v1000 = vmul.f32 %v999, %v997
    %v1001 = vmul.f32 %v1000, %v999
    %v1002 = vmul.f32 0.5, %v1001
    %v1003 = vsub.f32 1.5, %v1002
    %v1004 = vmul.f32 %v999, %v1003
    %vm1005 = vweird.f32 %v997
    %vm1006 = vweird.f32 %v999
    %vm1007 = vmor %vm1005, %vm1006
    %v1008 = vsel %vm1007, %v999, %v1004
    %v1009 = vrsqrt.pop %v998
    %v1010 = vmul.f32 %v1009, %v998
    %v1011 = vmul.f32 %v1010, %v1009
    %v1012 = vmul.f32 0.5, %v1011
    %v1013 = vsub.f32 1.5, %v1012
    %v1014 = vmul.f32 %v1009, %v1013
    %vm1015 = vweird.f32 %v998
    %vm1016 = vweird.f32 %v1009
    %vm1017 = vmor %vm1015, %vm1016
    %v1018 = vsel %vm1017, %v1009, %v1014
    %v1019 = vmul.f32 %v985, %v1008
    %v1020 = vmul.f32 %v986, %v1018
    %v1022 = vperm.slane %v975, 0
    %v1024 = vmul.f32 %v1019, %v1022
    %v1025 = vmul.f32 %v1020, %v1022
    %v1027 = vperm.slane %v976, 0
    %v1029 = vadd.f32 %v1024, %v1027
    %v1030 = vadd.f32 %v1025, %v1027
    %s1031 = scalar_lea.vmem %s1, 32
    %v1032 = vld [vmem:[%s1031] sm:$0xff]
    %v1033 = vld [vmem:[%s1031 + $0x8] sm:$0xff]
    %v1034 = vld [vmem:[%s1031 + $0x10] sm:$0xff]
    %v1035 = vld [vmem:[%s1031 + $0x18] sm:$0xff]
    %s1036 = scalar_lea.vmem %s2, 1
    %v1037 = vld [vmem:[%s1036] sm:$0x1]
    %v1039 = vperm.slane %v1037, 0
    %v1042 = vsel %vm167, %v1029, 0
    %v1045 = vsel %vm167, %v1030, 0
    %1047 = vmatpush.msra.mxu0 0.0
    %1048 = vmatpush.msra.mxu0 0.0
    %1049 = vmatpush.msra.mxu0 0.0
    %1050 = vmatpush.msra.mxu0 0.0
    %1051 = vmatpush.msra.mxu0 0.0
    %1052 = vmatpush.msra.mxu0 0.0
    %1053 = vmatpush.msra.mxu0 0.0
    %1054 = vmatpush.msra.mxu0 0.0
    %1055 = vmatpush.msra.mxu0 0.0
    %1056 = vmatpush.msra.mxu0 0.0
    %1057 = vmatpush.msra.mxu0 0.0
    %1058 = vmatpush.msra.mxu0 0.0
    %1059 = vmatpush.msra.mxu0 %v1035
    %1060 = vmatpush.msra.mxu0 %v1034
    %1061 = vmatpush.msra.mxu0 %v1033
    %1062 = vmatpush.msra.mxu0 %v1032
    %1063 = vmatmul.f32.gmra.mxu0 %v1042
    %v1064 = vpop.f32.mrf.mxu0
    %v1065 = vadd.f32 %v1039, %v1064
    %1066 = vmatmul.f32.gmra.mxu0 %v1045
    %v1067 = vpop.f32.mrf.mxu0
    %v1068 = vadd.f32 %v1039, %v1067
    %1069 = vdwg.mxu0
    %v1070 = vmul.f32 %v1065, 0.35355338
    %v1071 = vmul.f32 %v1068, 0.35355338
    %s1072 = scalar_lea.vmem %s3, 32
    %v1073 = vld [vmem:[%s1072] sm:$0xff]
    %v1074 = vld [vmem:[%s1072 + $0x8] sm:$0xff]
    %v1075 = vld [vmem:[%s1072 + $0x10] sm:$0xff]
    %v1076 = vld [vmem:[%s1072 + $0x18] sm:$0xff]
    %1079 = vrot.lane.b32.xlu0 %v1065, 96
    %v1080 = vpop.permute.xlu0 %1079
    %1081 = vrot.lane.b32.xlu0 %v1068, 96
    %v1082 = vpop.permute.xlu0 %1081
    %v1084 = vsel %vm209, %v1070, 0
    %v1087 = vsel %vm209, %v1071, 0
    %v1089 = vsel %vm209, %v1080, 0
    %v1091 = vsel %vm209, %v1082, 0
    %1093 = vmatpush.xpose.msra.mxu0 0.0
    %1094 = vmatpush.xpose.msra.mxu0 0.0
    %1095 = vmatpush.xpose.msra.mxu0 0.0
    %1096 = vmatpush.xpose.msra.mxu0 0.0
    %1097 = vmatpush.xpose.msra.mxu0 0.0
    %1098 = vmatpush.xpose.msra.mxu0 0.0
    %1099 = vmatpush.xpose.msra.mxu0 0.0
    %1100 = vmatpush.xpose.msra.mxu0 0.0
    %1101 = vmatpush.xpose.msra.mxu0 0.0
    %1102 = vmatpush.xpose.msra.mxu0 0.0
    %1103 = vmatpush.xpose.msra.mxu0 0.0
    %1104 = vmatpush.xpose.msra.mxu0 0.0
    %1105 = vmatpush.xpose.msra.mxu0 0.0
    %1106 = vmatpush.xpose.msra.mxu0 0.0
    %1107 = vmatpush.xpose.msra.mxu0 %v1091
    %1108 = vmatpush.xpose.msra.mxu0 %v1089
    %1109 = vmatmul.f32.gmra.mxu0 %v1084
    %v1110 = vpop.f32.mrf.mxu0
    %v1111 = vadd.f32 0.0, %v1110
    %1112 = vmatmul.f32.gmra.mxu0 %v1087
    %v1113 = vpop.f32.mrf.mxu0
    %v1114 = vadd.f32 0.0, %v1113
    %1115 = vdwg.mxu0
    %v1116 = vsel %vm157, %v1111, -1e+30
    %v1117 = vsel %vm158, %v1114, -1e+30
    %v1118 = vsel %vm245, %v1116, -inf
    %1119 = vmax.xlane.f32.xlu0 %v1118
    %v1120 = vpop.xlane.xlu0 %1119
    %v1121 = vsel %vm245, %v1117, -inf
    %1122 = vmax.xlane.f32.xlu0 %v1121
    %v1123 = vpop.xlane.xlu0 %1122
    %v1124 = vsub.f32 %v1116, %v1120
    %v1125 = vsub.f32 %v1117, %v1123
    %v1126 = vmul.f32 %v1124, 1.442695
    %v1127 = vpow.pop %v1126
    %v1128 = vmul.f32 %v1125, 1.442695
    %v1129 = vpow.pop %v1128
    %v1130 = vsel %vm245, %v1127, 0.0
    %1131 = vadd.xlane.f32.xlu0 %v1130
    %v1132 = vpop.xlane.xlu0 %1131
    %v1133 = vsel %vm245, %v1129, 0.0
    %1134 = vadd.xlane.f32.xlu0 %v1133
    %v1135 = vpop.xlane.xlu0 %1134
    %v1136 = vrcp.pop %v1132
    %v1137 = vmul.f32 %v1132, %v1136
    %v1138 = vsub.f32 1.0, %v1137
    %v1139 = vmul.f32 %v1136, %v1138
    %v1140 = vadd.f32 %v1136, %v1139
    %vm1141 = vweird.f32 %v1132
    %vm1142 = vweird.f32 %v1136
    %vm1143 = vmor %vm1141, %vm1142
    %v1144 = vsel %vm1143, %v1136, %v1140
    %v1145 = vand.u32 2147483647, %v1132
    %vm1146 = vcmp.eq.f32.partialorder %v1145, 8.507059e+37
    %v1147 = vand.u32 %v1132, 2147483648
    %v1148 = vor.u32 1.1754944e-38, %v1147
    %v1149 = vsel %vm1146, %v1148, %v1144
    %v1150 = vrcp.pop %v1135
    %v1151 = vmul.f32 %v1135, %v1150
    %v1152 = vsub.f32 1.0, %v1151
    %v1153 = vmul.f32 %v1150, %v1152
    %v1154 = vadd.f32 %v1150, %v1153
    %vm1155 = vweird.f32 %v1135
    %vm1156 = vweird.f32 %v1150
    %vm1157 = vmor %vm1155, %vm1156
    %v1158 = vsel %vm1157, %v1150, %v1154
    %v1159 = vand.u32 2147483647, %v1135
    %vm1160 = vcmp.eq.f32.partialorder %v1159, 8.507059e+37
    %v1161 = vand.u32 %v1135, 2147483648
    %v1162 = vor.u32 1.1754944e-38, %v1161
    %v1163 = vsel %vm1160, %v1162, %v1158
    %v1164 = vmul.f32 %v1127, %v1149
    %v1165 = vmul.f32 %v1129, %v1163
    %1166 = vrot.lane.b32.xlu0 %v1065, 64
    %v1167 = vpop.permute.xlu0 %1166
    %1168 = vrot.lane.b32.xlu0 %v1068, 64
    %v1169 = vpop.permute.xlu0 %1168
    %v1173 = vsel %vm245, %v1164, 0
    %v1176 = vsel %vm245, %v1165, 0
    %1178 = vmatpush.msra.mxu0 0.0
    %1179 = vmatpush.msra.mxu0 0.0
    %1180 = vmatpush.msra.mxu0 0.0
    %1181 = vmatpush.msra.mxu0 0.0
    %1182 = vmatpush.msra.mxu0 0.0
    %1183 = vmatpush.msra.mxu0 0.0
    %1184 = vmatpush.msra.mxu0 0.0
    %1185 = vmatpush.msra.mxu0 0.0
    %1186 = vmatpush.msra.mxu0 0.0
    %1187 = vmatpush.msra.mxu0 0.0
    %1188 = vmatpush.msra.mxu0 0.0
    %1189 = vmatpush.msra.mxu0 0.0
    %1190 = vmatpush.msra.mxu0 0.0
    %1191 = vmatpush.msra.mxu0 0.0
    %1192 = vmatpush.msra.mxu0 %v1169
    %1193 = vmatpush.msra.mxu0 %v1167
    %1194 = vmatmul.f32.gmra.mxu0 %v1173
    %v1195 = vpop.f32.mrf.mxu0
    %v1196 = vadd.f32 0.0, %v1195
    %1197 = vmatmul.f32.gmra.mxu0 %v1176
    %v1198 = vpop.f32.mrf.mxu0
    %v1199 = vadd.f32 0.0, %v1198
    %1200 = vdwg.mxu0
    %1201 = vrot.lane.b32.xlu0 %v1070, 120
    %v1202 = vpop.permute.xlu0 %1201
    %1203 = vrot.lane.b32.xlu0 %v1071, 120
    %v1204 = vpop.permute.xlu0 %1203
    %1205 = vrot.lane.b32.xlu0 %v1065, 88
    %v1206 = vpop.permute.xlu0 %1205
    %1207 = vrot.lane.b32.xlu0 %v1068, 88
    %v1208 = vpop.permute.xlu0 %1207
    %v1209 = vsel %vm209, %v1202, 0
    %v1211 = vsel %vm209, %v1204, 0
    %v1213 = vsel %vm209, %v1206, 0
    %v1215 = vsel %vm209, %v1208, 0
    %1217 = vmatpush.xpose.msra.mxu0 0.0
    %1218 = vmatpush.xpose.msra.mxu0 0.0
    %1219 = vmatpush.xpose.msra.mxu0 0.0
    %1220 = vmatpush.xpose.msra.mxu0 0.0
    %1221 = vmatpush.xpose.msra.mxu0 0.0
    %1222 = vmatpush.xpose.msra.mxu0 0.0
    %1223 = vmatpush.xpose.msra.mxu0 0.0
    %1224 = vmatpush.xpose.msra.mxu0 0.0
    %1225 = vmatpush.xpose.msra.mxu0 0.0
    %1226 = vmatpush.xpose.msra.mxu0 0.0
    %1227 = vmatpush.xpose.msra.mxu0 0.0
    %1228 = vmatpush.xpose.msra.mxu0 0.0
    %1229 = vmatpush.xpose.msra.mxu0 0.0
    %1230 = vmatpush.xpose.msra.mxu0 0.0
    %1231 = vmatpush.xpose.msra.mxu0 %v1215
    %1232 = vmatpush.xpose.msra.mxu0 %v1213
    %1233 = vmatmul.f32.gmra.mxu0 %v1209
    %v1234 = vpop.f32.mrf.mxu0
    %v1235 = vadd.f32 0.0, %v1234
    %1236 = vmatmul.f32.gmra.mxu0 %v1211
    %v1237 = vpop.f32.mrf.mxu0
    %v1238 = vadd.f32 0.0, %v1237
    %1239 = vdwg.mxu0
    %v1240 = vsel %vm157, %v1235, -1e+30
    %v1241 = vsel %vm158, %v1238, -1e+30
    %v1242 = vsel %vm245, %v1240, -inf
    %1243 = vmax.xlane.f32.xlu0 %v1242
    %v1244 = vpop.xlane.xlu0 %1243
    %v1245 = vsel %vm245, %v1241, -inf
    %1246 = vmax.xlane.f32.xlu0 %v1245
    %v1247 = vpop.xlane.xlu0 %1246
    %v1248 = vsub.f32 %v1240, %v1244
    %v1249 = vsub.f32 %v1241, %v1247
    %v1250 = vmul.f32 %v1248, 1.442695
    %v1251 = vpow.pop %v1250
    %v1252 = vmul.f32 %v1249, 1.442695
    %v1253 = vpow.pop %v1252
    %v1254 = vsel %vm245, %v1251, 0.0
    %1255 = vadd.xlane.f32.xlu0 %v1254
    %v1256 = vpop.xlane.xlu0 %1255
    %v1257 = vsel %vm245, %v1253, 0.0
    %1258 = vadd.xlane.f32.xlu0 %v1257
    %v1259 = vpop.xlane.xlu0 %1258
    %v1260 = vrcp.pop %v1256
    %v1261 = vmul.f32 %v1256, %v1260
    %v1262 = vsub.f32 1.0, %v1261
    %v1263 = vmul.f32 %v1260, %v1262
    %v1264 = vadd.f32 %v1260, %v1263
    %vm1265 = vweird.f32 %v1256
    %vm1266 = vweird.f32 %v1260
    %vm1267 = vmor %vm1265, %vm1266
    %v1268 = vsel %vm1267, %v1260, %v1264
    %v1269 = vand.u32 2147483647, %v1256
    %vm1270 = vcmp.eq.f32.partialorder %v1269, 8.507059e+37
    %v1271 = vand.u32 %v1256, 2147483648
    %v1272 = vor.u32 1.1754944e-38, %v1271
    %v1273 = vsel %vm1270, %v1272, %v1268
    %v1274 = vrcp.pop %v1259
    %v1275 = vmul.f32 %v1259, %v1274
    %v1276 = vsub.f32 1.0, %v1275
    %v1277 = vmul.f32 %v1274, %v1276
    %v1278 = vadd.f32 %v1274, %v1277
    %vm1279 = vweird.f32 %v1259
    %vm1280 = vweird.f32 %v1274
    %vm1281 = vmor %vm1279, %vm1280
    %v1282 = vsel %vm1281, %v1274, %v1278
    %v1283 = vand.u32 2147483647, %v1259
    %vm1284 = vcmp.eq.f32.partialorder %v1283, 8.507059e+37
    %v1285 = vand.u32 %v1259, 2147483648
    %v1286 = vor.u32 1.1754944e-38, %v1285
    %v1287 = vsel %vm1284, %v1286, %v1282
    %v1288 = vmul.f32 %v1251, %v1273
    %v1289 = vmul.f32 %v1253, %v1287
    %1290 = vrot.lane.b32.xlu0 %v1065, 56
    %v1291 = vpop.permute.xlu0 %1290
    %1292 = vrot.lane.b32.xlu0 %v1068, 56
    %v1293 = vpop.permute.xlu0 %1292
    %v1297 = vsel %vm245, %v1288, 0
    %v1300 = vsel %vm245, %v1289, 0
    %1302 = vmatpush.msra.mxu0 0.0
    %1303 = vmatpush.msra.mxu0 0.0
    %1304 = vmatpush.msra.mxu0 0.0
    %1305 = vmatpush.msra.mxu0 0.0
    %1306 = vmatpush.msra.mxu0 0.0
    %1307 = vmatpush.msra.mxu0 0.0
    %1308 = vmatpush.msra.mxu0 0.0
    %1309 = vmatpush.msra.mxu0 0.0
    %1310 = vmatpush.msra.mxu0 0.0
    %1311 = vmatpush.msra.mxu0 0.0
    %1312 = vmatpush.msra.mxu0 0.0
    %1313 = vmatpush.msra.mxu0 0.0
    %1314 = vmatpush.msra.mxu0 0.0
    %1315 = vmatpush.msra.mxu0 0.0
    %1316 = vmatpush.msra.mxu0 %v1293
    %1317 = vmatpush.msra.mxu0 %v1291
    %1318 = vmatmul.f32.gmra.mxu0 %v1297
    %v1319 = vpop.f32.mrf.mxu0
    %v1320 = vadd.f32 0.0, %v1319
    %1321 = vmatmul.f32.gmra.mxu0 %v1300
    %v1322 = vpop.f32.mrf.mxu0
    %v1323 = vadd.f32 0.0, %v1322
    %1324 = vdwg.mxu0
    %v1326 = vsel %vm209, %v1320, 0
    %v1329 = vsel %vm209, %v1323, 0
    %1331 = vmatpush.msra.mxu0 0.0
    %1332 = vmatpush.msra.mxu0 0.0
    %1333 = vmatpush.msra.mxu0 0.0
    %1334 = vmatpush.msra.mxu0 0.0
    %1335 = vmatpush.msra.mxu0 0.0
    %1336 = vmatpush.msra.mxu0 0.0
    %1337 = vmatpush.msra.mxu0 0.0
    %1338 = vmatpush.msra.mxu0 0.0
    %1339 = vmatpush.msra.mxu0 0.0
    %1340 = vmatpush.msra.mxu0 0.0
    %1341 = vmatpush.msra.mxu0 0.0
    %1342 = vmatpush.msra.mxu0 0.0
    %1343 = vmatpush.msra.mxu0 0.0
    %1344 = vmatpush.msra.mxu0 0.0
    %1345 = vmatpush.msra.mxu0 0.0
    %1346 = vmatpush.msra.mxu0 %v1074
    %1347 = vmatmul.f32.gmra.mxu0 %v1326
    %v1348 = vpop.f32.mrf.mxu0
    %v1349 = vadd.f32 0.0, %v1348
    %1350 = vmatmul.f32.gmra.mxu0 %v1329
    %v1351 = vpop.f32.mrf.mxu0
    %v1352 = vadd.f32 0.0, %v1351
    %1353 = vdwg.mxu0
    %v1355 = vsel %vm209, %v1196, 0
    %v1358 = vsel %vm209, %v1199, 0
    %1360 = vmatpush.msra.mxu0 0.0
    %1361 = vmatpush.msra.mxu0 0.0
    %1362 = vmatpush.msra.mxu0 0.0
    %1363 = vmatpush.msra.mxu0 0.0
    %1364 = vmatpush.msra.mxu0 0.0
    %1365 = vmatpush.msra.mxu0 0.0
    %1366 = vmatpush.msra.mxu0 0.0
    %1367 = vmatpush.msra.mxu0 0.0
    %1368 = vmatpush.msra.mxu0 0.0
    %1369 = vmatpush.msra.mxu0 0.0
    %1370 = vmatpush.msra.mxu0 0.0
    %1371 = vmatpush.msra.mxu0 0.0
    %1372 = vmatpush.msra.mxu0 0.0
    %1373 = vmatpush.msra.mxu0 0.0
    %1374 = vmatpush.msra.mxu0 0.0
    %1375 = vmatpush.msra.mxu0 %v1073
    %1376 = vmatmul.f32.gmra.mxu0 %v1355
    %v1377 = vpop.f32.mrf.mxu0
    %v1378 = vadd.f32 %v1349, %v1377
    %1379 = vmatmul.f32.gmra.mxu0 %v1358
    %v1380 = vpop.f32.mrf.mxu0
    %v1381 = vadd.f32 %v1352, %v1380
    %1382 = vdwg.mxu0
    %1383 = vrot.lane.b32.xlu0 %v1070, 112
    %v1384 = vpop.permute.xlu0 %1383
    %1385 = vrot.lane.b32.xlu0 %v1071, 112
    %v1386 = vpop.permute.xlu0 %1385
    %1387 = vrot.lane.b32.xlu0 %v1065, 80
    %v1388 = vpop.permute.xlu0 %1387
    %1389 = vrot.lane.b32.xlu0 %v1068, 80
    %v1390 = vpop.permute.xlu0 %1389
    %v1391 = vsel %vm209, %v1384, 0
    %v1393 = vsel %vm209, %v1386, 0
    %v1395 = vsel %vm209, %v1388, 0
    %v1397 = vsel %vm209, %v1390, 0
    %1399 = vmatpush.xpose.msra.mxu0 0.0
    %1400 = vmatpush.xpose.msra.mxu0 0.0
    %1401 = vmatpush.xpose.msra.mxu0 0.0
    %1402 = vmatpush.xpose.msra.mxu0 0.0
    %1403 = vmatpush.xpose.msra.mxu0 0.0
    %1404 = vmatpush.xpose.msra.mxu0 0.0
    %1405 = vmatpush.xpose.msra.mxu0 0.0
    %1406 = vmatpush.xpose.msra.mxu0 0.0
    %1407 = vmatpush.xpose.msra.mxu0 0.0
    %1408 = vmatpush.xpose.msra.mxu0 0.0
    %1409 = vmatpush.xpose.msra.mxu0 0.0
    %1410 = vmatpush.xpose.msra.mxu0 0.0
    %1411 = vmatpush.xpose.msra.mxu0 0.0
    %1412 = vmatpush.xpose.msra.mxu0 0.0
    %1413 = vmatpush.xpose.msra.mxu0 %v1397
    %1414 = vmatpush.xpose.msra.mxu0 %v1395
    %1415 = vmatmul.f32.gmra.mxu0 %v1391
    %v1416 = vpop.f32.mrf.mxu0
    %v1417 = vadd.f32 0.0, %v1416
    %1418 = vmatmul.f32.gmra.mxu0 %v1393
    %v1419 = vpop.f32.mrf.mxu0
    %v1420 = vadd.f32 0.0, %v1419
    %1421 = vdwg.mxu0
    %v1422 = vsel %vm157, %v1417, -1e+30
    %v1423 = vsel %vm158, %v1420, -1e+30
    %v1424 = vsel %vm245, %v1422, -inf
    %1425 = vmax.xlane.f32.xlu0 %v1424
    %v1426 = vpop.xlane.xlu0 %1425
    %v1427 = vsel %vm245, %v1423, -inf
    %1428 = vmax.xlane.f32.xlu0 %v1427
    %v1429 = vpop.xlane.xlu0 %1428
    %v1430 = vsub.f32 %v1422, %v1426
    %v1431 = vsub.f32 %v1423, %v1429
    %v1432 = vmul.f32 %v1430, 1.442695
    %v1433 = vpow.pop %v1432
    %v1434 = vmul.f32 %v1431, 1.442695
    %v1435 = vpow.pop %v1434
    %v1436 = vsel %vm245, %v1433, 0.0
    %1437 = vadd.xlane.f32.xlu0 %v1436
    %v1438 = vpop.xlane.xlu0 %1437
    %v1439 = vsel %vm245, %v1435, 0.0
    %1440 = vadd.xlane.f32.xlu0 %v1439
    %v1441 = vpop.xlane.xlu0 %1440
    %v1442 = vrcp.pop %v1438
    %v1443 = vmul.f32 %v1438, %v1442
    %v1444 = vsub.f32 1.0, %v1443
    %v1445 = vmul.f32 %v1442, %v1444
    %v1446 = vadd.f32 %v1442, %v1445
    %vm1447 = vweird.f32 %v1438
    %vm1448 = vweird.f32 %v1442
    %vm1449 = vmor %vm1447, %vm1448
    %v1450 = vsel %vm1449, %v1442, %v1446
    %v1451 = vand.u32 2147483647, %v1438
    %vm1452 = vcmp.eq.f32.partialorder %v1451, 8.507059e+37
    %v1453 = vand.u32 %v1438, 2147483648
    %v1454 = vor.u32 1.1754944e-38, %v1453
    %v1455 = vsel %vm1452, %v1454, %v1450
    %v1456 = vrcp.pop %v1441
    %v1457 = vmul.f32 %v1441, %v1456
    %v1458 = vsub.f32 1.0, %v1457
    %v1459 = vmul.f32 %v1456, %v1458
    %v1460 = vadd.f32 %v1456, %v1459
    %vm1461 = vweird.f32 %v1441
    %vm1462 = vweird.f32 %v1456
    %vm1463 = vmor %vm1461, %vm1462
    %v1464 = vsel %vm1463, %v1456, %v1460
    %v1465 = vand.u32 2147483647, %v1441
    %vm1466 = vcmp.eq.f32.partialorder %v1465, 8.507059e+37
    %v1467 = vand.u32 %v1441, 2147483648
    %v1468 = vor.u32 1.1754944e-38, %v1467
    %v1469 = vsel %vm1466, %v1468, %v1464
    %v1470 = vmul.f32 %v1433, %v1455
    %v1471 = vmul.f32 %v1435, %v1469
    %1472 = vrot.lane.b32.xlu0 %v1065, 48
    %v1473 = vpop.permute.xlu0 %1472
    %1474 = vrot.lane.b32.xlu0 %v1068, 48
    %v1475 = vpop.permute.xlu0 %1474
    %v1479 = vsel %vm245, %v1470, 0
    %v1482 = vsel %vm245, %v1471, 0
    %1484 = vmatpush.msra.mxu0 0.0
    %1485 = vmatpush.msra.mxu0 0.0
    %1486 = vmatpush.msra.mxu0 0.0
    %1487 = vmatpush.msra.mxu0 0.0
    %1488 = vmatpush.msra.mxu0 0.0
    %1489 = vmatpush.msra.mxu0 0.0
    %1490 = vmatpush.msra.mxu0 0.0
    %1491 = vmatpush.msra.mxu0 0.0
    %1492 = vmatpush.msra.mxu0 0.0
    %1493 = vmatpush.msra.mxu0 0.0
    %1494 = vmatpush.msra.mxu0 0.0
    %1495 = vmatpush.msra.mxu0 0.0
    %1496 = vmatpush.msra.mxu0 0.0
    %1497 = vmatpush.msra.mxu0 0.0
    %1498 = vmatpush.msra.mxu0 %v1475
    %1499 = vmatpush.msra.mxu0 %v1473
    %1500 = vmatmul.f32.gmra.mxu0 %v1479
    %v1501 = vpop.f32.mrf.mxu0
    %v1502 = vadd.f32 0.0, %v1501
    %1503 = vmatmul.f32.gmra.mxu0 %v1482
    %v1504 = vpop.f32.mrf.mxu0
    %v1505 = vadd.f32 0.0, %v1504
    %1506 = vdwg.mxu0
    %v1508 = vsel %vm209, %v1502, 0
    %v1511 = vsel %vm209, %v1505, 0
    %1513 = vmatpush.msra.mxu0 0.0
    %1514 = vmatpush.msra.mxu0 0.0
    %1515 = vmatpush.msra.mxu0 0.0
    %1516 = vmatpush.msra.mxu0 0.0
    %1517 = vmatpush.msra.mxu0 0.0
    %1518 = vmatpush.msra.mxu0 0.0
    %1519 = vmatpush.msra.mxu0 0.0
    %1520 = vmatpush.msra.mxu0 0.0
    %1521 = vmatpush.msra.mxu0 0.0
    %1522 = vmatpush.msra.mxu0 0.0
    %1523 = vmatpush.msra.mxu0 0.0
    %1524 = vmatpush.msra.mxu0 0.0
    %1525 = vmatpush.msra.mxu0 0.0
    %1526 = vmatpush.msra.mxu0 0.0
    %1527 = vmatpush.msra.mxu0 0.0
    %1528 = vmatpush.msra.mxu0 %v1075
    %1529 = vmatmul.f32.gmra.mxu0 %v1508
    %v1530 = vpop.f32.mrf.mxu0
    %v1531 = vadd.f32 0.0, %v1530
    %1532 = vmatmul.f32.gmra.mxu0 %v1511
    %v1533 = vpop.f32.mrf.mxu0
    %v1534 = vadd.f32 0.0, %v1533
    %1535 = vdwg.mxu0
    %v1536 = vadd.f32 %v1378, %v1531
    %v1537 = vadd.f32 %v1381, %v1534
    %1538 = vrot.lane.b32.xlu0 %v1070, 104
    %v1539 = vpop.permute.xlu0 %1538
    %1540 = vrot.lane.b32.xlu0 %v1071, 104
    %v1541 = vpop.permute.xlu0 %1540
    %1542 = vrot.lane.b32.xlu0 %v1065, 72
    %v1543 = vpop.permute.xlu0 %1542
    %1544 = vrot.lane.b32.xlu0 %v1068, 72
    %v1545 = vpop.permute.xlu0 %1544
    %v1546 = vsel %vm209, %v1539, 0
    %v1548 = vsel %vm209, %v1541, 0
    %v1550 = vsel %vm209, %v1543, 0
    %v1552 = vsel %vm209, %v1545, 0
    %1554 = vmatpush.xpose.msra.mxu0 0.0
    %1555 = vmatpush.xpose.msra.mxu0 0.0
    %1556 = vmatpush.xpose.msra.mxu0 0.0
    %1557 = vmatpush.xpose.msra.mxu0 0.0
    %1558 = vmatpush.xpose.msra.mxu0 0.0
    %1559 = vmatpush.xpose.msra.mxu0 0.0
    %1560 = vmatpush.xpose.msra.mxu0 0.0
    %1561 = vmatpush.xpose.msra.mxu0 0.0
    %1562 = vmatpush.xpose.msra.mxu0 0.0
    %1563 = vmatpush.xpose.msra.mxu0 0.0
    %1564 = vmatpush.xpose.msra.mxu0 0.0
    %1565 = vmatpush.xpose.msra.mxu0 0.0
    %1566 = vmatpush.xpose.msra.mxu0 0.0
    %1567 = vmatpush.xpose.msra.mxu0 0.0
    %1568 = vmatpush.xpose.msra.mxu0 %v1552
    %1569 = vmatpush.xpose.msra.mxu0 %v1550
    %1570 = vmatmul.f32.gmra.mxu0 %v1546
    %v1571 = vpop.f32.mrf.mxu0
    %v1572 = vadd.f32 0.0, %v1571
    %1573 = vmatmul.f32.gmra.mxu0 %v1548
    %v1574 = vpop.f32.mrf.mxu0
    %v1575 = vadd.f32 0.0, %v1574
    %1576 = vdwg.mxu0
    %v1577 = vsel %vm157, %v1572, -1e+30
    %v1578 = vsel %vm158, %v1575, -1e+30
    %v1579 = vsel %vm245, %v1577, -inf
    %1580 = vmax.xlane.f32.xlu0 %v1579
    %v1581 = vpop.xlane.xlu0 %1580
    %v1582 = vsel %vm245, %v1578, -inf
    %1583 = vmax.xlane.f32.xlu0 %v1582
    %v1584 = vpop.xlane.xlu0 %1583
    %v1585 = vsub.f32 %v1577, %v1581
    %v1586 = vsub.f32 %v1578, %v1584
    %v1587 = vmul.f32 %v1585, 1.442695
    %v1588 = vpow.pop %v1587
    %v1589 = vmul.f32 %v1586, 1.442695
    %v1590 = vpow.pop %v1589
    %v1591 = vsel %vm245, %v1588, 0.0
    %1592 = vadd.xlane.f32.xlu0 %v1591
    %v1593 = vpop.xlane.xlu0 %1592
    %v1594 = vsel %vm245, %v1590, 0.0
    %1595 = vadd.xlane.f32.xlu0 %v1594
    %v1596 = vpop.xlane.xlu0 %1595
    %v1597 = vrcp.pop %v1593
    %v1598 = vmul.f32 %v1593, %v1597
    %v1599 = vsub.f32 1.0, %v1598
    %v1600 = vmul.f32 %v1597, %v1599
    %v1601 = vadd.f32 %v1597, %v1600
    %vm1602 = vweird.f32 %v1593
    %vm1603 = vweird.f32 %v1597
    %vm1604 = vmor %vm1602, %vm1603
    %v1605 = vsel %vm1604, %v1597, %v1601
    %v1606 = vand.u32 2147483647, %v1593
    %vm1607 = vcmp.eq.f32.partialorder %v1606, 8.507059e+37
    %v1608 = vand.u32 %v1593, 2147483648
    %v1609 = vor.u32 1.1754944e-38, %v1608
    %v1610 = vsel %vm1607, %v1609, %v1605
    %v1611 = vrcp.pop %v1596
    %v1612 = vmul.f32 %v1596, %v1611
    %v1613 = vsub.f32 1.0, %v1612
    %v1614 = vmul.f32 %v1611, %v1613
    %v1615 = vadd.f32 %v1611, %v1614
    %vm1616 = vweird.f32 %v1596
    %vm1617 = vweird.f32 %v1611
    %vm1618 = vmor %vm1616, %vm1617
    %v1619 = vsel %vm1618, %v1611, %v1615
    %v1620 = vand.u32 2147483647, %v1596
    %vm1621 = vcmp.eq.f32.partialorder %v1620, 8.507059e+37
    %v1622 = vand.u32 %v1596, 2147483648
    %v1623 = vor.u32 1.1754944e-38, %v1622
    %v1624 = vsel %vm1621, %v1623, %v1619
    %v1625 = vmul.f32 %v1588, %v1610
    %v1626 = vmul.f32 %v1590, %v1624
    %1627 = vrot.lane.b32.xlu0 %v1065, 40
    %v1628 = vpop.permute.xlu0 %1627
    %1629 = vrot.lane.b32.xlu0 %v1068, 40
    %v1630 = vpop.permute.xlu0 %1629
    %v1634 = vsel %vm245, %v1625, 0
    %v1637 = vsel %vm245, %v1626, 0
    %1639 = vmatpush.msra.mxu0 0.0
    %1640 = vmatpush.msra.mxu0 0.0
    %1641 = vmatpush.msra.mxu0 0.0
    %1642 = vmatpush.msra.mxu0 0.0
    %1643 = vmatpush.msra.mxu0 0.0
    %1644 = vmatpush.msra.mxu0 0.0
    %1645 = vmatpush.msra.mxu0 0.0
    %1646 = vmatpush.msra.mxu0 0.0
    %1647 = vmatpush.msra.mxu0 0.0
    %1648 = vmatpush.msra.mxu0 0.0
    %1649 = vmatpush.msra.mxu0 0.0
    %1650 = vmatpush.msra.mxu0 0.0
    %1651 = vmatpush.msra.mxu0 0.0
    %1652 = vmatpush.msra.mxu0 0.0
    %1653 = vmatpush.msra.mxu0 %v1630
    %1654 = vmatpush.msra.mxu0 %v1628
    %1655 = vmatmul.f32.gmra.mxu0 %v1634
    %v1656 = vpop.f32.mrf.mxu0
    %v1657 = vadd.f32 0.0, %v1656
    %1658 = vmatmul.f32.gmra.mxu0 %v1637
    %v1659 = vpop.f32.mrf.mxu0
    %v1660 = vadd.f32 0.0, %v1659
    %1661 = vdwg.mxu0
    %v1663 = vsel %vm209, %v1657, 0
    %v1666 = vsel %vm209, %v1660, 0
    %1668 = vmatpush.msra.mxu0 0.0
    %1669 = vmatpush.msra.mxu0 0.0
    %1670 = vmatpush.msra.mxu0 0.0
    %1671 = vmatpush.msra.mxu0 0.0
    %1672 = vmatpush.msra.mxu0 0.0
    %1673 = vmatpush.msra.mxu0 0.0
    %1674 = vmatpush.msra.mxu0 0.0
    %1675 = vmatpush.msra.mxu0 0.0
    %1676 = vmatpush.msra.mxu0 0.0
    %1677 = vmatpush.msra.mxu0 0.0
    %1678 = vmatpush.msra.mxu0 0.0
    %1679 = vmatpush.msra.mxu0 0.0
    %1680 = vmatpush.msra.mxu0 0.0
    %1681 = vmatpush.msra.mxu0 0.0
    %1682 = vmatpush.msra.mxu0 0.0
    %1683 = vmatpush.msra.mxu0 %v1076
    %1684 = vmatmul.f32.gmra.mxu0 %v1663
    %v1685 = vpop.f32.mrf.mxu0
    %v1686 = vadd.f32 0.0, %v1685
    %1687 = vmatmul.f32.gmra.mxu0 %v1666
    %v1688 = vpop.f32.mrf.mxu0
    %v1689 = vadd.f32 0.0, %v1688
    %1690 = vdwg.mxu0
    %v1691 = vadd.f32 %v1536, %v1686
    %v1692 = vadd.f32 %v1537, %v1689
    %s1693 = scalar_lea.vmem [#allocation5], 1
    %v1694 = vld [vmem:[%s1693] sm:$0x1]
    %v1696 = vperm.slane %v1694, 0
    %v1698 = vadd.f32 %v1691, %v1696
    %v1699 = vadd.f32 %v1692, %v1696
    %v1700 = vadd.f32 %v1029, %v1698
    %v1701 = vadd.f32 %v1030, %v1699
    %s1702 = scalar_lea.vmem %s5, 1
    %v1703 = vld [vmem:[%s1702] sm:$0x1]
    %s1704 = scalar_lea.vmem [#allocation7], 1
    %v1705 = vld [vmem:[%s1704] sm:$0x1]
    %v1706 = vsel %vm167, %v1700, 0.0
    %1707 = vadd.xlane.f32.xlu0 %v1706
    %v1708 = vpop.xlane.xlu0 %1707
    %v1709 = vsel %vm167, %v1701, 0.0
    %1710 = vadd.xlane.f32.xlu0 %v1709
    %v1711 = vpop.xlane.xlu0 %1710
    %v1712 = vmul.f32 %v1708, %v843
    %v1713 = vmul.f32 %v1711, %v843
    %v1714 = vsub.f32 %v1700, %v1712
    %v1715 = vsub.f32 %v1701, %v1713
    %v1716 = vmul.f32 %v1714, %v1714
    %v1717 = vmul.f32 %v1715, %v1715
    %v1718 = vsel %vm167, %v1716, 0.0
    %1719 = vadd.xlane.f32.xlu0 %v1718
    %v1720 = vpop.xlane.xlu0 %1719
    %v1721 = vsel %vm167, %v1717, 0.0
    %1722 = vadd.xlane.f32.xlu0 %v1721
    %v1723 = vpop.xlane.xlu0 %1722
    %v1724 = vmul.f32 %v1720, %v843
    %v1725 = vmul.f32 %v1723, %v843
    %v1726 = vadd.f32 %v1724, 1e-05
    %v1727 = vadd.f32 %v1725, 1e-05
    %v1728 = vrsqrt.pop %v1726
    %v1729 = vmul.f32 %v1728, %v1726
    %v1730 = vmul.f32 %v1729, %v1728
    %v1731 = vmul.f32 0.5, %v1730
    %v1732 = vsub.f32 1.5, %v1731
    %v1733 = vmul.f32 %v1728, %v1732
    %vm1734 = vweird.f32 %v1726
    %vm1735 = vweird.f32 %v1728
    %vm1736 = vmor %vm1734, %vm1735
    %v1737 = vsel %vm1736, %v1728, %v1733
    %v1738 = vrsqrt.pop %v1727
    %v1739 = vmul.f32 %v1738, %v1727
    %v1740 = vmul.f32 %v1739, %v1738
    %v1741 = vmul.f32 0.5, %v1740
    %v1742 = vsub.f32 1.5, %v1741
    %v1743 = vmul.f32 %v1738, %v1742
    %vm1744 = vweird.f32 %v1727
    %vm1745 = vweird.f32 %v1738
    %vm1746 = vmor %vm1744, %vm1745
    %v1747 = vsel %vm1746, %v1738, %v1743
    %v1748 = vmul.f32 %v1714, %v1737
    %v1749 = vmul.f32 %v1715, %v1747
    %v1751 = vperm.slane %v1703, 0
    %v1753 = vmul.f32 %v1748, %v1751
    %v1754 = vmul.f32 %v1749, %v1751
    %v1756 = vperm.slane %v1705, 0
    %v1758 = vadd.f32 %v1753, %v1756
    %v1759 = vadd.f32 %v1754, %v1756
    %s1760 = scalar_lea.vmem %s7, 32
    %v1761 = vld [vmem:[%s1760] sm:$0xff]
    %v1762 = vld [vmem:[%s1760 + $0x8] sm:$0xff]
    %v1763 = vld [vmem:[%s1760 + $0x10] sm:$0xff]
    %v1764 = vld [vmem:[%s1760 + $0x18] sm:$0xff]
    %s1765 = scalar_lea.vmem %s8, 1
    %v1766 = vld [vmem:[%s1765] sm:$0x1]
    %v1768 = vperm.slane %v1766, 0
    %v1771 = vsel %vm167, %v1758, 0
    %v1774 = vsel %vm167, %v1759, 0
    %1776 = vmatpush.msra.mxu0 0.0
    %1777 = vmatpush.msra.mxu0 0.0
    %1778 = vmatpush.msra.mxu0 0.0
    %1779 = vmatpush.msra.mxu0 0.0
    %1780 = vmatpush.msra.mxu0 0.0
    %1781 = vmatpush.msra.mxu0 0.0
    %1782 = vmatpush.msra.mxu0 0.0
    %1783 = vmatpush.msra.mxu0 0.0
    %1784 = vmatpush.msra.mxu0 0.0
    %1785 = vmatpush.msra.mxu0 0.0
    %1786 = vmatpush.msra.mxu0 0.0
    %1787 = vmatpush.msra.mxu0 0.0
    %1788 = vmatpush.msra.mxu0 %v1764
    %1789 = vmatpush.msra.mxu0 %v1763
    %1790 = vmatpush.msra.mxu0 %v1762
    %1791 = vmatpush.msra.mxu0 %v1761
    %1792 = vmatmul.f32.gmra.mxu0 %v1771
    %v1793 = vpop.f32.mrf.mxu0
    %v1794 = vadd.f32 %v1768, %v1793
    %1795 = vmatmul.f32.gmra.mxu0 %v1774
    %v1796 = vpop.f32.mrf.mxu0
    %v1797 = vadd.f32 %v1768, %v1796
    %1798 = vdwg.mxu0
    %v1799 = vmax.f32 %v1794, 0.0
    %v1800 = vmax.f32 %v1797, 0.0
    %s1801 = scalar_lea.vmem %s9, 64
    %v1802 = vld [vmem:[%s1801] sm:$0xff]
    %v1803 = vld [vmem:[%s1801 + $0x8] sm:$0xff]
    %v1804 = vld [vmem:[%s1801 + $0x10] sm:$0xff]
    %v1805 = vld [vmem:[%s1801 + $0x18] sm:$0xff]
    %v1806 = vld [vmem:[%s1801 + $0x20] sm:$0xff]
    %v1807 = vld [vmem:[%s1801 + $0x28] sm:$0xff]
    %v1808 = vld [vmem:[%s1801 + $0x30] sm:$0xff]
    %v1809 = vld [vmem:[%s1801 + $0x38] sm:$0xff]
    %s1810 = scalar_lea.vmem %s10, 1
    %v1811 = vld [vmem:[%s1810] sm:$0x1]
    %v1813 = vperm.slane %v1811, 0
    %v1816 = vsel %vm943, %v1799, 0
    %v1819 = vsel %vm943, %v1800, 0
    %1821 = vmatpush.msra.mxu0 0.0
    %1822 = vmatpush.msra.mxu0 0.0
    %1823 = vmatpush.msra.mxu0 0.0
    %1824 = vmatpush.msra.mxu0 0.0
    %1825 = vmatpush.msra.mxu0 0.0
    %1826 = vmatpush.msra.mxu0 0.0
    %1827 = vmatpush.msra.mxu0 0.0
    %1828 = vmatpush.msra.mxu0 0.0
    %1829 = vmatpush.msra.mxu0 %v1809
    %1830 = vmatpush.msra.mxu0 %v1808
    %1831 = vmatpush.msra.mxu0 %v1807
    %1832 = vmatpush.msra.mxu0 %v1806
    %1833 = vmatpush.msra.mxu0 %v1805
    %1834 = vmatpush.msra.mxu0 %v1804
    %1835 = vmatpush.msra.mxu0 %v1803
    %1836 = vmatpush.msra.mxu0 %v1802
    %1837 = vmatmul.f32.gmra.mxu0 %v1816
    %v1838 = vpop.f32.mrf.mxu0
    %v1839 = vadd.f32 %v1813, %v1838
    %1840 = vmatmul.f32.gmra.mxu0 %v1819
    %v1841 = vpop.f32.mrf.mxu0
    %v1842 = vadd.f32 %v1813, %v1841
    %1843 = vdwg.mxu0
    %v1844 = vadd.f32 %v1758, %v1839
    %v1845 = vadd.f32 %v1759, %v1842
    %s1846 = scalar_lea.vmem %s11, 1
    %v1847 = vld [vmem:[%s1846] sm:$0x1]
    %s1848 = scalar_lea.vmem [#allocation8], 1
    %v1849 = vld [vmem:[%s1848] sm:$0x1]
    %v1850 = vsel %vm167, %v1844, 0.0
    %1851 = vadd.xlane.f32.xlu0 %v1850
    %v1852 = vpop.xlane.xlu0 %1851
    %v1853 = vsel %vm167, %v1845, 0.0
    %1854 = vadd.xlane.f32.xlu0 %v1853
    %v1855 = vpop.xlane.xlu0 %1854
    %v1856 = vmul.f32 %v1852, %v843
    %v1857 = vmul.f32 %v1855, %v843
    %v1858 = vsub.f32 %v1844, %v1856
    %v1859 = vsub.f32 %v1845, %v1857
    %v1860 = vmul.f32 %v1858, %v1858
    %v1861 = vmul.f32 %v1859, %v1859
    %v1862 = vsel %vm167, %v1860, 0.0
    %1863 = vadd.xlane.f32.xlu0 %v1862
    %v1864 = vpop.xlane.xlu0 %1863
    %v1865 = vsel %vm167, %v1861, 0.0
    %1866 = vadd.xlane.f32.xlu0 %v1865
    %v1867 = vpop.xlane.xlu0 %1866
    %v1868 = vmul.f32 %v1864, %v843
    %v1869 = vmul.f32 %v1867, %v843
    %v1870 = vadd.f32 %v1868, 1e-05
    %v1871 = vadd.f32 %v1869, 1e-05
    %v1872 = vrsqrt.pop %v1870
    %v1873 = vmul.f32 %v1872, %v1870
    %v1874 = vmul.f32 %v1873, %v1872
    %v1875 = vmul.f32 0.5, %v1874
    %v1876 = vsub.f32 1.5, %v1875
    %v1877 = vmul.f32 %v1872, %v1876
    %vm1878 = vweird.f32 %v1870
    %vm1879 = vweird.f32 %v1872
    %vm1880 = vmor %vm1878, %vm1879
    %v1881 = vsel %vm1880, %v1872, %v1877
    %v1882 = vrsqrt.pop %v1871
    %v1883 = vmul.f32 %v1882, %v1871
    %v1884 = vmul.f32 %v1883, %v1882
    %v1885 = vmul.f32 0.5, %v1884
    %v1886 = vsub.f32 1.5, %v1885
    %v1887 = vmul.f32 %v1882, %v1886
    %vm1888 = vweird.f32 %v1871
    %vm1889 = vweird.f32 %v1882
    %vm1890 = vmor %vm1888, %vm1889
    %v1891 = vsel %vm1890, %v1882, %v1887
    %v1892 = vmul.f32 %v1858, %v1881
    %v1893 = vmul.f32 %v1859, %v1891
    %v1895 = vperm.slane %v1847, 0
    %v1897 = vmul.f32 %v1892, %v1895
    %v1898 = vmul.f32 %v1893, %v1895
    %v1900 = vperm.slane %v1849, 0
    %v1902 = vadd.f32 %v1897, %v1900
    %v1903 = vadd.f32 %v1898, %v1900
    %v1904 = vld [vmem:[%s13] sm:$0x1]
    %v1905 = vld [vmem:[%s14] sm:$0x1]
    %v1906 = vsel %vm167, %v1902, 0.0
    %1907 = vadd.xlane.f32.xlu0 %v1906
    %v1908 = vpop.xlane.xlu0 %1907
    %v1909 = vsel %vm167, %v1903, 0.0
    %1910 = vadd.xlane.f32.xlu0 %v1909
    %v1911 = vpop.xlane.xlu0 %1910
    %v1912 = vmul.f32 %v1908, %v843
    %v1913 = vmul.f32 %v1911, %v843
    %v1914 = vsub.f32 %v1902, %v1912
    %v1915 = vsub.f32 %v1903, %v1913
    %v1916 = vmul.f32 %v1914, %v1914
    %v1917 = vmul.f32 %v1915, %v1915
    %v1918 = vsel %vm167, %v1916, 0.0
    %1919 = vadd.xlane.f32.xlu0 %v1918
    %v1920 = vpop.xlane.xlu0 %1919
    %v1921 = vsel %vm167, %v1917, 0.0
    %1922 = vadd.xlane.f32.xlu0 %v1921
    %v1923 = vpop.xlane.xlu0 %1922
    %v1924 = vmul.f32 %v1920, %v843
    %v1925 = vmul.f32 %v1923, %v843
    %v1926 = vadd.f32 %v1924, 1e-05
    %v1927 = vadd.f32 %v1925, 1e-05
    %v1928 = vrsqrt.pop %v1926
    %v1929 = vmul.f32 %v1928, %v1926
    %v1930 = vmul.f32 %v1929, %v1928
    %v1931 = vmul.f32 0.5, %v1930
    %v1932 = vsub.f32 1.5, %v1931
    %v1933 = vmul.f32 %v1928, %v1932
    %vm1934 = vweird.f32 %v1926
    %vm1935 = vweird.f32 %v1928
    %vm1936 = vmor %vm1934, %vm1935
    %v1937 = vsel %vm1936, %v1928, %v1933
    %v1938 = vrsqrt.pop %v1927
    %v1939 = vmul.f32 %v1938, %v1927
    %v1940 = vmul.f32 %v1939, %v1938
    %v1941 = vmul.f32 0.5, %v1940
    %v1942 = vsub.f32 1.5, %v1941
    %v1943 = vmul.f32 %v1938, %v1942
    %vm1944 = vweird.f32 %v1927
    %vm1945 = vweird.f32 %v1938
    %vm1946 = vmor %vm1944, %vm1945
    %v1947 = vsel %vm1946, %v1938, %v1943
    %v1948 = vmul.f32 %v1914, %v1937
    %v1949 = vmul.f32 %v1915, %v1947
    %v1951 = vperm.slane %v1904, 0
    %v1953 = vmul.f32 %v1948, %v1951
    %v1954 = vmul.f32 %v1949, %v1951
    %v1956 = vperm.slane %v1905, 0
    %v1958 = vadd.f32 %v1953, %v1956
    %v1959 = vadd.f32 %v1954, %v1956
    %1960 = vst.msk [vmem:[#allocation10] sm:$0xff] %vm167, %v1958
    %1961 = vst.msk [vmem:[#allocation10 + $0x8] sm:$0xff] %vm167, %v1959
    // Predicated region
    $region78: #{transformer_encoder.1} parent=1 // pred_check
      _
    $region79: #{transformer_encoder.1} parent=1 // pred_check_branch
      %1963 = sbr.rel (0) target = $region81
    $region80: #{transformer_encoder.1} parent=1 // pred_region
      %1965 = vsyncadd [#allocation4], 0
      %s1966 = sshll.u32 [#allocation10], 4
      %s1967 = int_to_ptr.vmem [resolvable:$true] %s1966
      %s1968 = sshll.u32 %s15, 4
      %s1969 = int_to_ptr.hbm [resolvable:$true] %s1968
      %1974 = dma.vmem_to_hbm [thread:$0]  %s1967, 256, %s1969, [#allocation4], 128, 128, 8
    $region81: #{transformer_encoder.1} parent=1 // pred_fallthru
      _
    // Predicated region
    $region82: #{transformer_encoder.1} parent=1 // pred_check
      _
    $region83: #{transformer_encoder.1} parent=1 // pred_check_branch
      %1976 = sbr.rel (0) target = $region85
    $region84: #{transformer_encoder.1} parent=1 // pred_region
      %1978 = dma.done [#allocation4], 256
    $region85: #{transformer_encoder.1} parent=1 // pred_fallthru
      _
    %1979 = vsyncpa [#allocation3], 1
    %1980 = vsyncpa [#allocation6], 1
    %1981 = vsyncpa [#allocation9], 1
    %1982 = vsyncpa [#allocation4], 1

</llo_original>
